<compile_context>
chip_gen: v5e
topology: v5e:2x2
jax: 0.10.0
libtpu: 0.0.40
codegen_flags: <defaults>
</compile_context>

<pallas_src>
import functools

import jax
import jax.numpy as jnp
from jax import lax
from jax.experimental import pallas as pl
from jax.experimental.pallas import tpu as pltpu

HIDDEN = 64
NUM_LAYERS = 2

# Gate order used throughout this file (kernel + reference + init):
#   [i, f, o, g]   -> sigmoid, sigmoid, sigmoid, tanh
# PyTorch stores LSTM gates as [i, f, g, o]; to import torch weights, permute
# the 4H axis accordingly.  Placing the single tanh gate last keeps the
# activation step whole-vreg with a single lane mask.


def ehpi_lstm_kernel(x_ref,          # (T*B, D_in)   time-major, batch-padded
                     w_ih1_ref,      # (D_in, 4H)
                     w_hh1_ref,      # (H, 4H)
                     b1_ref,         # (1, 4H)   = b_ih1 + b_hh1
                     w2_ref,         # (2H, 4H)  = [W_ih2 ; W_hh2]
                     b2_ref,         # (1, 4H)   = b_ih2 + b_hh2
                     w_out_ref,      # (H, Cp)   lane-padded
                     b_out_ref,      # (1, Cp)
                     out_ref,        # (B, Cp)
                     *, seq_len, batch):
    H = HIDDEN
    B = batch
    T = seq_len

    # ---------------- off-critical-path work --------------------------------
    # Hoisted layer-1 input projection for ALL timesteps, bias folded in:
    # (T*B, D_in) @ (D_in, 4H) -> (T*B, 4H).  One MXU-friendly matmul instead
    # of T tiny ones on the sequential critical path.
    xproj = (
        jnp.dot(x_ref[...], w_ih1_ref[...], preferred_element_type=jnp.float32)
        + b1_ref[...]
    )

    w_hh1 = w_hh1_ref[...]                                   # (H, 4H)
    w2 = w2_ref[...]                                         # (2H, 4H)
    b2 = jnp.broadcast_to(b2_ref[...], (B, 4 * H))           # broadcast once

    # Lane mask: gates [i, f, o] -> sigmoid, [g] -> tanh.  Built once.
    sig_mask = lax.broadcasted_iota(jnp.int32, (B, 4 * H), 1) < 3 * H

    def combine(gates, c):
        # Whole-vreg activations + lane select (EUP slot is otherwise idle).
        act = jnp.where(sig_mask, jax.nn.sigmoid(gates), jnp.tanh(gates))
        i_g = act[:, 0 * H:1 * H]
        f_g = act[:, 1 * H:2 * H]
        o_g = act[:, 2 * H:3 * H]
        g_g = act[:, 3 * H:4 * H]
        c_new = f_g * c + i_g * g_g
        h_new = o_g * jnp.tanh(c_new)
        return h_new, c_new

    zeros = jnp.zeros((B, H), jnp.float32)
    h1 = c1 = h2 = c2 = zeros

    # Fully unrolled static time loop: layer-2 step t and layer-1 step t+1 are
    # data-independent, so the scheduler can overlap their MXU/EUP/VPU work.
    for t in range(T):
        # layer 1: only the small recurrent matmul remains in the loop.
        gates1 = xproj[t * B:(t + 1) * B, :] + jnp.dot(
            h1, w_hh1, preferred_element_type=jnp.float32)
        h1, c1 = combine(gates1, c1)

        # layer 2: one fused (B, 2H) x (2H, 4H) matmul (K = 128).
        hcat = jnp.concatenate([h1, h2], axis=1)             # (B, 2H)
        gates2 = jnp.dot(hcat, w2, preferred_element_type=jnp.float32) + b2
        h2, c2 = combine(gates2, c2)

    # hidden2label on the last timestep of the top layer (lane-dense store).
    out_ref[...] = (
        jnp.dot(h2, w_out_ref[...], preferred_element_type=jnp.float32)
        + b_out_ref[...]
    )


def _round_up(n, m):
    return (n + m - 1) // m * m


@functools.partial(jax.jit, static_argnames=("num_classes",))
def ehpi_lstm_forward(x, params, num_classes):
    """x: (B, T, num_joints*2) float32 — PyTorch batch-first layout."""
    B, T, D_in = x.shape
    Bp = _round_up(B, 8)               # sublane-dense batch
    Cp = _round_up(num_classes, 128)   # lane-dense output

    # time-major, pad batch, flatten leading dims for the hoisted projection.
    x_tm = jnp.transpose(x, (1, 0, 2))                       # (T, B, D_in)
    x_tm = jnp.pad(x_tm, ((0, 0), (0, Bp - B), (0, 0)))      # (T, Bp, D_in)
    x2d = x_tm.reshape(T * Bp, D_in)

    w_out = jnp.pad(params["w_out"], ((0, 0), (0, Cp - num_classes)))
    b_out = jnp.pad(params["b_out"], ((0, 0), (0, Cp - num_classes)))

    kernel = functools.partial(ehpi_lstm_kernel, seq_len=T, batch=Bp)
    out = pl.pallas_call(
        kernel,
        out_shape=jax.ShapeDtypeStruct((Bp, Cp), jnp.float32),
        # Whole problem (< 1 MiB) is VMEM-resident; modest scoped-VMEM limit.
        compiler_params=pltpu.CompilerParams(vmem_limit_bytes=4 << 20),
        # TODO(synk): for production-sized batches add a batch grid with
        # dimension_semantics=("parallel",) (v7x: 2 TCs) and stream x per
        # timestep via manual DMA when T*B*D_in no longer fits VMEM.
    )(x2d, params["w_ih1"], params["w_hh1"], params["b1"],
      params["w2"], params["b2"], w_out, b_out)
    return out[:B, :num_classes]


def init_params(key, num_joints, num_classes):
    """Deterministic init matching PyTorch LSTM/Linear parameter shapes.

    Weights are stored pre-transposed to (in, 4H)/(H, 4H), the two PyTorch
    biases are folded into one row, the two layer-2 weight matrices are
    pre-concatenated into a single (2H, 4H) operand, and the 4H (gate) axis is
    ordered [i, f, o, g] (permute from PyTorch's [i, f, g, o] when importing).
    """
    d_in = num_joints * 2
    H = HIDDEN
    k = 1.0 / jnp.sqrt(H)
    keys = jax.random.split(key, 12)

    def u(kk, shape):
        return jax.random.uniform(kk, shape, jnp.float32, -k, k)

    # layer 1
    w_ih1 = u(keys[0], (d_in, 4 * H))
    w_hh1 = u(keys[1], (H, 4 * H))
    b1 = (u(keys[2], (4 * H,)) + u(keys[3], (4 * H,)))[None, :]
    # layer 2 (input is hidden of layer 1) — pre-concatenated [W_ih2; W_hh2]
    w_ih2 = u(keys[4], (H, 4 * H))
    w_hh2 = u(keys[5], (H, 4 * H))
    w2 = jnp.concatenate([w_ih2, w_hh2], axis=0)             # (2H, 4H)
    b2 = (u(keys[6], (4 * H,)) + u(keys[7], (4 * H,)))[None, :]
    # hidden2label
    w_out = jax.random.uniform(keys[8], (H, num_classes), jnp.float32, -k, k)
    b_out = jax.random.uniform(keys[9], (num_classes,), jnp.float32,
                               -k, k)[None, :]

    return {
        "w_ih1": w_ih1, "w_hh1": w_hh1, "b1": b1,
        "w2": w2, "b2": b2,
        "w_out": w_out, "b_out": b_out,
    }


def reference_forward(x, params):
    """Pure-JAX reference of the PyTorch module's forward (same gate order)."""
    B, T, _ = x.shape
    H = HIDDEN
    w_ih2 = params["w2"][:H]
    w_hh2 = params["w2"][H:]

    def cell(x_t, h, c, w_ih, w_hh, b):
        g = x_t @ w_ih + h @ w_hh + b
        i = jax.nn.sigmoid(g[:, 0 * H:1 * H])
        f = jax.nn.sigmoid(g[:, 1 * H:2 * H])
        o = jax.nn.sigmoid(g[:, 2 * H:3 * H])
        gg = jnp.tanh(g[:, 3 * H:4 * H])
        c_new = f * c + i * gg
        return o * jnp.tanh(c_new), c_new

    h1 = c1 = h2 = c2 = jnp.zeros((B, H), jnp.float32)
    for t in range(T):
        h1, c1 = cell(x[:, t, :], h1, c1,
                      params["w_ih1"], params["w_hh1"], params["b1"])
        h2, c2 = cell(h1, h2, c2, w_ih2, w_hh2, params["b2"])
    return h2 @ params["w_out"] + params["b_out"]


if __name__ == "__main__":
    num_joints = 18          # -> input size 36 (num_input_parameters)
    num_classes = 5
    B, T = 2, 8

    key = jax.random.PRNGKey(0)
    k_x, k_p = jax.random.split(key)
    x = jax.random.normal(k_x, (B, T, num_joints * 2), jnp.float32)
    params = init_params(k_p, num_joints, num_classes)

    out = ehpi_lstm_forward(x, params, num_classes)
    out = jax.block_until_ready(out)

    ref = reference_forward(x, params)
    assert out.shape == (B, num_classes)
    assert jnp.allclose(out, ref, atol=1e-4, rtol=1e-4), "mismatch vs reference"

    print("KERNEL_OK")
</pallas_src>

<mosaic_0001>
module attributes {stable_mosaic.version = 11 : i64} {
  func.func @ehpi_lstm_kernel(%arg0: memref<64x36xf32, #tpu.memory_space<vmem>>, %arg1: memref<36x256xf32, #tpu.memory_space<vmem>>, %arg2: memref<64x256xf32, #tpu.memory_space<vmem>>, %arg3: memref<1x256xf32, #tpu.memory_space<vmem>>, %arg4: memref<128x256xf32, #tpu.memory_space<vmem>>, %arg5: memref<1x256xf32, #tpu.memory_space<vmem>>, %arg6: memref<64x128xf32, #tpu.memory_space<vmem>>, %arg7: memref<1x128xf32, #tpu.memory_space<vmem>>, %arg8: memref<8x128xf32, #tpu.memory_space<vmem>>) attributes {dimension_semantics = [], scalar_prefetch = 0 : i64, scratch_operands = 0 : i64, tpu.core_type = #tpu.core_type<tc>} {
    %c0 = arith.constant 0 : index
    %c0_0 = arith.constant 0 : index
    %0 = vector.load %arg0[%c0, %c0_0] : memref<64x36xf32, #tpu.memory_space<vmem>>, vector<64x36xf32>
    %c0_1 = arith.constant 0 : index
    %c0_2 = arith.constant 0 : index
    %1 = vector.load %arg1[%c0_1, %c0_2] : memref<36x256xf32, #tpu.memory_space<vmem>>, vector<36x256xf32>
    %cst = arith.constant dense<0.000000e+00> : vector<64x256xf32>
    %2 = tpu.matmul %0, %1, %cst {dimension_numbers = #tpu.dot_dimension_numbers<[1], [0], [0], [1], [0, 0, 1, 1], [], []>} : vector<64x36xf32>, vector<36x256xf32>, vector<64x256xf32> -> vector<64x256xf32>
    %c0_3 = arith.constant 0 : index
    %c0_4 = arith.constant 0 : index
    %3 = vector.load %arg3[%c0_3, %c0_4] : memref<1x256xf32, #tpu.memory_space<vmem>>, vector<1x256xf32>
    %4 = vector.broadcast %3 : vector<1x256xf32> to vector<64x256xf32>
    %5 = arith.addf %2, %4 : vector<64x256xf32>
    %c0_5 = arith.constant 0 : index
    %c0_6 = arith.constant 0 : index
    %6 = vector.load %arg2[%c0_5, %c0_6] : memref<64x256xf32, #tpu.memory_space<vmem>>, vector<64x256xf32>
    %c0_7 = arith.constant 0 : index
    %c0_8 = arith.constant 0 : index
    %7 = vector.load %arg4[%c0_7, %c0_8] : memref<128x256xf32, #tpu.memory_space<vmem>>, vector<128x256xf32>
    %c0_9 = arith.constant 0 : index
    %c0_10 = arith.constant 0 : index
    %8 = vector.load %arg5[%c0_9, %c0_10] : memref<1x256xf32, #tpu.memory_space<vmem>>, vector<1x256xf32>
    %9 = vector.shape_cast %8 : vector<1x256xf32> to vector<1x256xf32>
    %10 = vector.broadcast %9 : vector<1x256xf32> to vector<8x256xf32>
    %11 = tpu.iota {dimensions = array<i32: 1>} : vector<8x256xi32>
    %c192_i32 = arith.constant 192 : i32
    %12 = vector.broadcast %c192_i32 : i32 to vector<8x256xi32>
    %13 = arith.cmpi slt, %11, %12 : vector<8x256xi32>
    %cst_11 = arith.constant 0.000000e+00 : f32
    %14 = vector.broadcast %cst_11 : f32 to vector<8x64xf32>
    %15 = vector.extract_strided_slice %5 {offsets = [0, 0], sizes = [8, 256], strides = [1, 1]} : vector<64x256xf32> to vector<8x256xf32>
    %cst_12 = arith.constant dense<0.000000e+00> : vector<8x256xf32>
    %16 = tpu.matmul %14, %6, %cst_12 {dimension_numbers = #tpu.dot_dimension_numbers<[1], [0], [0], [1], [0, 0, 1, 1], [], []>} : vector<8x64xf32>, vector<64x256xf32>, vector<8x256xf32> -> vector<8x256xf32>
    %17 = arith.addf %15, %16 : vector<8x256xf32>
    %18 = arith.negf %17 : vector<8x256xf32>
    %19 = math.exp %18 : vector<8x256xf32>
    %cst_13 = arith.constant 1.000000e+00 : f32
    %20 = vector.broadcast %cst_13 : f32 to vector<8x256xf32>
    %21 = arith.addf %20, %19 : vector<8x256xf32>
    %22 = arith.divf %20, %21 : vector<8x256xf32>
    %23 = math.tanh %17 : vector<8x256xf32>
    %24 = arith.select %13, %22, %23 : vector<8x256xi1>, vector<8x256xf32>
    %25 = vector.extract_strided_slice %24 {offsets = [0, 0], sizes = [8, 64], strides = [1, 1]} : vector<8x256xf32> to vector<8x64xf32>
    %26 = vector.extract_strided_slice %24 {offsets = [0, 64], sizes = [8, 64], strides = [1, 1]} : vector<8x256xf32> to vector<8x64xf32>
    %27 = vector.extract_strided_slice %24 {offsets = [0, 128], sizes = [8, 64], strides = [1, 1]} : vector<8x256xf32> to vector<8x64xf32>
    %28 = vector.extract_strided_slice %24 {offsets = [0, 192], sizes = [8, 64], strides = [1, 1]} : vector<8x256xf32> to vector<8x64xf32>
    %29 = arith.mulf %26, %14 : vector<8x64xf32>
    %30 = arith.mulf %25, %28 : vector<8x64xf32>
    %31 = arith.addf %29, %30 : vector<8x64xf32>
    %32 = math.tanh %31 : vector<8x64xf32>
    %33 = arith.mulf %27, %32 : vector<8x64xf32>
    %34 = tpu.concatenate %33, %14 in 1 : vector<8x64xf32>, vector<8x64xf32> -> vector<8x128xf32>
    %cst_14 = arith.constant dense<0.000000e+00> : vector<8x256xf32>
    %35 = tpu.matmul %34, %7, %cst_14 {dimension_numbers = #tpu.dot_dimension_numbers<[1], [0], [0], [1], [0, 0, 1, 1], [], []>} : vector<8x128xf32>, vector<128x256xf32>, vector<8x256xf32> -> vector<8x256xf32>
    %36 = arith.addf %35, %10 : vector<8x256xf32>
    %37 = arith.negf %36 : vector<8x256xf32>
    %38 = math.exp %37 : vector<8x256xf32>
    %cst_15 = arith.constant 1.000000e+00 : f32
    %39 = vector.broadcast %cst_15 : f32 to vector<8x256xf32>
    %40 = arith.addf %39, %38 : vector<8x256xf32>
    %41 = arith.divf %39, %40 : vector<8x256xf32>
    %42 = math.tanh %36 : vector<8x256xf32>
    %43 = arith.select %13, %41, %42 : vector<8x256xi1>, vector<8x256xf32>
    %44 = vector.extract_strided_slice %43 {offsets = [0, 0], sizes = [8, 64], strides = [1, 1]} : vector<8x256xf32> to vector<8x64xf32>
    %45 = vector.extract_strided_slice %43 {offsets = [0, 64], sizes = [8, 64], strides = [1, 1]} : vector<8x256xf32> to vector<8x64xf32>
    %46 = vector.extract_strided_slice %43 {offsets = [0, 128], sizes = [8, 64], strides = [1, 1]} : vector<8x256xf32> to vector<8x64xf32>
    %47 = vector.extract_strided_slice %43 {offsets = [0, 192], sizes = [8, 64], strides = [1, 1]} : vector<8x256xf32> to vector<8x64xf32>
    %48 = arith.mulf %45, %14 : vector<8x64xf32>
    %49 = arith.mulf %44, %47 : vector<8x64xf32>
    %50 = arith.addf %48, %49 : vector<8x64xf32>
    %51 = math.tanh %50 : vector<8x64xf32>
    %52 = arith.mulf %46, %51 : vector<8x64xf32>
    %53 = vector.extract_strided_slice %5 {offsets = [8, 0], sizes = [8, 256], strides = [1, 1]} : vector<64x256xf32> to vector<8x256xf32>
    %cst_16 = arith.constant dense<0.000000e+00> : vector<8x256xf32>
    %54 = tpu.matmul %33, %6, %cst_16 {dimension_numbers = #tpu.dot_dimension_numbers<[1], [0], [0], [1], [0, 0, 1, 1], [], []>} : vector<8x64xf32>, vector<64x256xf32>, vector<8x256xf32> -> vector<8x256xf32>
    %55 = arith.addf %53, %54 : vector<8x256xf32>
    %56 = arith.negf %55 : vector<8x256xf32>
    %57 = math.exp %56 : vector<8x256xf32>
    %cst_17 = arith.constant 1.000000e+00 : f32
    %58 = vector.broadcast %cst_17 : f32 to vector<8x256xf32>
    %59 = arith.addf %58, %57 : vector<8x256xf32>
    %60 = arith.divf %58, %59 : vector<8x256xf32>
    %61 = math.tanh %55 : vector<8x256xf32>
    %62 = arith.select %13, %60, %61 : vector<8x256xi1>, vector<8x256xf32>
    %63 = vector.extract_strided_slice %62 {offsets = [0, 0], sizes = [8, 64], strides = [1, 1]} : vector<8x256xf32> to vector<8x64xf32>
    %64 = vector.extract_strided_slice %62 {offsets = [0, 64], sizes = [8, 64], strides = [1, 1]} : vector<8x256xf32> to vector<8x64xf32>
    %65 = vector.extract_strided_slice %62 {offsets = [0, 128], sizes = [8, 64], strides = [1, 1]} : vector<8x256xf32> to vector<8x64xf32>
    %66 = vector.extract_strided_slice %62 {offsets = [0, 192], sizes = [8, 64], strides = [1, 1]} : vector<8x256xf32> to vector<8x64xf32>
    %67 = arith.mulf %64, %31 : vector<8x64xf32>
    %68 = arith.mulf %63, %66 : vector<8x64xf32>
    %69 = arith.addf %67, %68 : vector<8x64xf32>
    %70 = math.tanh %69 : vector<8x64xf32>
    %71 = arith.mulf %65, %70 : vector<8x64xf32>
    %72 = tpu.concatenate %71, %52 in 1 : vector<8x64xf32>, vector<8x64xf32> -> vector<8x128xf32>
    %cst_18 = arith.constant dense<0.000000e+00> : vector<8x256xf32>
    %73 = tpu.matmul %72, %7, %cst_18 {dimension_numbers = #tpu.dot_dimension_numbers<[1], [0], [0], [1], [0, 0, 1, 1], [], []>} : vector<8x128xf32>, vector<128x256xf32>, vector<8x256xf32> -> vector<8x256xf32>
    %74 = arith.addf %73, %10 : vector<8x256xf32>
    %75 = arith.negf %74 : vector<8x256xf32>
    %76 = math.exp %75 : vector<8x256xf32>
    %cst_19 = arith.constant 1.000000e+00 : f32
    %77 = vector.broadcast %cst_19 : f32 to vector<8x256xf32>
    %78 = arith.addf %77, %76 : vector<8x256xf32>
    %79 = arith.divf %77, %78 : vector<8x256xf32>
    %80 = math.tanh %74 : vector<8x256xf32>
    %81 = arith.select %13, %79, %80 : vector<8x256xi1>, vector<8x256xf32>
    %82 = vector.extract_strided_slice %81 {offsets = [0, 0], sizes = [8, 64], strides = [1, 1]} : vector<8x256xf32> to vector<8x64xf32>
    %83 = vector.extract_strided_slice %81 {offsets = [0, 64], sizes = [8, 64], strides = [1, 1]} : vector<8x256xf32> to vector<8x64xf32>
    %84 = vector.extract_strided_slice %81 {offsets = [0, 128], sizes = [8, 64], strides = [1, 1]} : vector<8x256xf32> to vector<8x64xf32>
    %85 = vector.extract_strided_slice %81 {offsets = [0, 192], sizes = [8, 64], strides = [1, 1]} : vector<8x256xf32> to vector<8x64xf32>
    %86 = arith.mulf %83, %50 : vector<8x64xf32>
    %87 = arith.mulf %82, %85 : vector<8x64xf32>
    %88 = arith.addf %86, %87 : vector<8x64xf32>
    %89 = math.tanh %88 : vector<8x64xf32>
    %90 = arith.mulf %84, %89 : vector<8x64xf32>
    %91 = vector.extract_strided_slice %5 {offsets = [16, 0], sizes = [8, 256], strides = [1, 1]} : vector<64x256xf32> to vector<8x256xf32>
    %cst_20 = arith.constant dense<0.000000e+00> : vector<8x256xf32>
    %92 = tpu.matmul %71, %6, %cst_20 {dimension_numbers = #tpu.dot_dimension_numbers<[1], [0], [0], [1], [0, 0, 1, 1], [], []>} : vector<8x64xf32>, vector<64x256xf32>, vector<8x256xf32> -> vector<8x256xf32>
    %93 = arith.addf %91, %92 : vector<8x256xf32>
    %94 = arith.negf %93 : vector<8x256xf32>
    %95 = math.exp %94 : vector<8x256xf32>
    %cst_21 = arith.constant 1.000000e+00 : f32
    %96 = vector.broadcast %cst_21 : f32 to vector<8x256xf32>
    %97 = arith.addf %96, %95 : vector<8x256xf32>
    %98 = arith.divf %96, %97 : vector<8x256xf32>
    %99 = math.tanh %93 : vector<8x256xf32>
    %100 = arith.select %13, %98, %99 : vector<8x256xi1>, vector<8x256xf32>
    %101 = vector.extract_strided_slice %100 {offsets = [0, 0], sizes = [8, 64], strides = [1, 1]} : vector<8x256xf32> to vector<8x64xf32>
    %102 = vector.extract_strided_slice %100 {offsets = [0, 64], sizes = [8, 64], strides = [1, 1]} : vector<8x256xf32> to vector<8x64xf32>
    %103 = vector.extract_strided_slice %100 {offsets = [0, 128], sizes = [8, 64], strides = [1, 1]} : vector<8x256xf32> to vector<8x64xf32>
    %104 = vector.extract_strided_slice %100 {offsets = [0, 192], sizes = [8, 64], strides = [1, 1]} : vector<8x256xf32> to vector<8x64xf32>
    %105 = arith.mulf %102, %69 : vector<8x64xf32>
    %106 = arith.mulf %101, %104 : vector<8x64xf32>
    %107 = arith.addf %105, %106 : vector<8x64xf32>
    %108 = math.tanh %107 : vector<8x64xf32>
    %109 = arith.mulf %103, %108 : vector<8x64xf32>
    %110 = tpu.concatenate %109, %90 in 1 : vector<8x64xf32>, vector<8x64xf32> -> vector<8x128xf32>
    %cst_22 = arith.constant dense<0.000000e+00> : vector<8x256xf32>
    %111 = tpu.matmul %110, %7, %cst_22 {dimension_numbers = #tpu.dot_dimension_numbers<[1], [0], [0], [1], [0, 0, 1, 1], [], []>} : vector<8x128xf32>, vector<128x256xf32>, vector<8x256xf32> -> vector<8x256xf32>
    %112 = arith.addf %111, %10 : vector<8x256xf32>
    %113 = arith.negf %112 : vector<8x256xf32>
    %114 = math.exp %113 : vector<8x256xf32>
    %cst_23 = arith.constant 1.000000e+00 : f32
    %115 = vector.broadcast %cst_23 : f32 to vector<8x256xf32>
    %116 = arith.addf %115, %114 : vector<8x256xf32>
    %117 = arith.divf %115, %116 : vector<8x256xf32>
    %118 = math.tanh %112 : vector<8x256xf32>
    %119 = arith.select %13, %117, %118 : vector<8x256xi1>, vector<8x256xf32>
    %120 = vector.extract_strided_slice %119 {offsets = [0, 0], sizes = [8, 64], strides = [1, 1]} : vector<8x256xf32> to vector<8x64xf32>
    %121 = vector.extract_strided_slice %119 {offsets = [0, 64], sizes = [8, 64], strides = [1, 1]} : vector<8x256xf32> to vector<8x64xf32>
    %122 = vector.extract_strided_slice %119 {offsets = [0, 128], sizes = [8, 64], strides = [1, 1]} : vector<8x256xf32> to vector<8x64xf32>
    %123 = vector.extract_strided_slice %119 {offsets = [0, 192], sizes = [8, 64], strides = [1, 1]} : vector<8x256xf32> to vector<8x64xf32>
    %124 = arith.mulf %121, %88 : vector<8x64xf32>
    %125 = arith.mulf %120, %123 : vector<8x64xf32>
    %126 = arith.addf %124, %125 : vector<8x64xf32>
    %127 = math.tanh %126 : vector<8x64xf32>
    %128 = arith.mulf %122, %127 : vector<8x64xf32>
    %129 = vector.extract_strided_slice %5 {offsets = [24, 0], sizes = [8, 256], strides = [1, 1]} : vector<64x256xf32> to vector<8x256xf32>
    %cst_24 = arith.constant dense<0.000000e+00> : vector<8x256xf32>
    %130 = tpu.matmul %109, %6, %cst_24 {dimension_numbers = #tpu.dot_dimension_numbers<[1], [0], [0], [1], [0, 0, 1, 1], [], []>} : vector<8x64xf32>, vector<64x256xf32>, vector<8x256xf32> -> vector<8x256xf32>
    %131 = arith.addf %129, %130 : vector<8x256xf32>
    %132 = arith.negf %131 : vector<8x256xf32>
    %133 = math.exp %132 : vector<8x256xf32>
    %cst_25 = arith.constant 1.000000e+00 : f32
    %134 = vector.broadcast %cst_25 : f32 to vector<8x256xf32>
    %135 = arith.addf %134, %133 : vector<8x256xf32>
    %136 = arith.divf %134, %135 : vector<8x256xf32>
    %137 = math.tanh %131 : vector<8x256xf32>
    %138 = arith.select %13, %136, %137 : vector<8x256xi1>, vector<8x256xf32>
    %139 = vector.extract_strided_slice %138 {offsets = [0, 0], sizes = [8, 64], strides = [1, 1]} : vector<8x256xf32> to vector<8x64xf32>
    %140 = vector.extract_strided_slice %138 {offsets = [0, 64], sizes = [8, 64], strides = [1, 1]} : vector<8x256xf32> to vector<8x64xf32>
    %141 = vector.extract_strided_slice %138 {offsets = [0, 128], sizes = [8, 64], strides = [1, 1]} : vector<8x256xf32> to vector<8x64xf32>
    %142 = vector.extract_strided_slice %138 {offsets = [0, 192], sizes = [8, 64], strides = [1, 1]} : vector<8x256xf32> to vector<8x64xf32>
    %143 = arith.mulf %140, %107 : vector<8x64xf32>
    %144 = arith.mulf %139, %142 : vector<8x64xf32>
    %145 = arith.addf %143, %144 : vector<8x64xf32>
    %146 = math.tanh %145 : vector<8x64xf32>
    %147 = arith.mulf %141, %146 : vector<8x64xf32>
    %148 = tpu.concatenate %147, %128 in 1 : vector<8x64xf32>, vector<8x64xf32> -> vector<8x128xf32>
    %cst_26 = arith.constant dense<0.000000e+00> : vector<8x256xf32>
    %149 = tpu.matmul %148, %7, %cst_26 {dimension_numbers = #tpu.dot_dimension_numbers<[1], [0], [0], [1], [0, 0, 1, 1], [], []>} : vector<8x128xf32>, vector<128x256xf32>, vector<8x256xf32> -> vector<8x256xf32>
    %150 = arith.addf %149, %10 : vector<8x256xf32>
    %151 = arith.negf %150 : vector<8x256xf32>
    %152 = math.exp %151 : vector<8x256xf32>
    %cst_27 = arith.constant 1.000000e+00 : f32
    %153 = vector.broadcast %cst_27 : f32 to vector<8x256xf32>
    %154 = arith.addf %153, %152 : vector<8x256xf32>
    %155 = arith.divf %153, %154 : vector<8x256xf32>
    %156 = math.tanh %150 : vector<8x256xf32>
    %157 = arith.select %13, %155, %156 : vector<8x256xi1>, vector<8x256xf32>
    %158 = vector.extract_strided_slice %157 {offsets = [0, 0], sizes = [8, 64], strides = [1, 1]} : vector<8x256xf32> to vector<8x64xf32>
    %159 = vector.extract_strided_slice %157 {offsets = [0, 64], sizes = [8, 64], strides = [1, 1]} : vector<8x256xf32> to vector<8x64xf32>
    %160 = vector.extract_strided_slice %157 {offsets = [0, 128], sizes = [8, 64], strides = [1, 1]} : vector<8x256xf32> to vector<8x64xf32>
    %161 = vector.extract_strided_slice %157 {offsets = [0, 192], sizes = [8, 64], strides = [1, 1]} : vector<8x256xf32> to vector<8x64xf32>
    %162 = arith.mulf %159, %126 : vector<8x64xf32>
    %163 = arith.mulf %158, %161 : vector<8x64xf32>
    %164 = arith.addf %162, %163 : vector<8x64xf32>
    %165 = math.tanh %164 : vector<8x64xf32>
    %166 = arith.mulf %160, %165 : vector<8x64xf32>
    %167 = vector.extract_strided_slice %5 {offsets = [32, 0], sizes = [8, 256], strides = [1, 1]} : vector<64x256xf32> to vector<8x256xf32>
    %cst_28 = arith.constant dense<0.000000e+00> : vector<8x256xf32>
    %168 = tpu.matmul %147, %6, %cst_28 {dimension_numbers = #tpu.dot_dimension_numbers<[1], [0], [0], [1], [0, 0, 1, 1], [], []>} : vector<8x64xf32>, vector<64x256xf32>, vector<8x256xf32> -> vector<8x256xf32>
    %169 = arith.addf %167, %168 : vector<8x256xf32>
    %170 = arith.negf %169 : vector<8x256xf32>
    %171 = math.exp %170 : vector<8x256xf32>
    %cst_29 = arith.constant 1.000000e+00 : f32
    %172 = vector.broadcast %cst_29 : f32 to vector<8x256xf32>
    %173 = arith.addf %172, %171 : vector<8x256xf32>
    %174 = arith.divf %172, %173 : vector<8x256xf32>
    %175 = math.tanh %169 : vector<8x256xf32>
    %176 = arith.select %13, %174, %175 : vector<8x256xi1>, vector<8x256xf32>
    %177 = vector.extract_strided_slice %176 {offsets = [0, 0], sizes = [8, 64], strides = [1, 1]} : vector<8x256xf32> to vector<8x64xf32>
    %178 = vector.extract_strided_slice %176 {offsets = [0, 64], sizes = [8, 64], strides = [1, 1]} : vector<8x256xf32> to vector<8x64xf32>
    %179 = vector.extract_strided_slice %176 {offsets = [0, 128], sizes = [8, 64], strides = [1, 1]} : vector<8x256xf32> to vector<8x64xf32>
    %180 = vector.extract_strided_slice %176 {offsets = [0, 192], sizes = [8, 64], strides = [1, 1]} : vector<8x256xf32> to vector<8x64xf32>
    %181 = arith.mulf %178, %145 : vector<8x64xf32>
    %182 = arith.mulf %177, %180 : vector<8x64xf32>
    %183 = arith.addf %181, %182 : vector<8x64xf32>
    %184 = math.tanh %183 : vector<8x64xf32>
    %185 = arith.mulf %179, %184 : vector<8x64xf32>
    %186 = tpu.concatenate %185, %166 in 1 : vector<8x64xf32>, vector<8x64xf32> -> vector<8x128xf32>
    %cst_30 = arith.constant dense<0.000000e+00> : vector<8x256xf32>
    %187 = tpu.matmul %186, %7, %cst_30 {dimension_numbers = #tpu.dot_dimension_numbers<[1], [0], [0], [1], [0, 0, 1, 1], [], []>} : vector<8x128xf32>, vector<128x256xf32>, vector<8x256xf32> -> vector<8x256xf32>
    %188 = arith.addf %187, %10 : vector<8x256xf32>
    %189 = arith.negf %188 : vector<8x256xf32>
    %190 = math.exp %189 : vector<8x256xf32>
    %cst_31 = arith.constant 1.000000e+00 : f32
    %191 = vector.broadcast %cst_31 : f32 to vector<8x256xf32>
    %192 = arith.addf %191, %190 : vector<8x256xf32>
    %193 = arith.divf %191, %192 : vector<8x256xf32>
    %194 = math.tanh %188 : vector<8x256xf32>
    %195 = arith.select %13, %193, %194 : vector<8x256xi1>, vector<8x256xf32>
    %196 = vector.extract_strided_slice %195 {offsets = [0, 0], sizes = [8, 64], strides = [1, 1]} : vector<8x256xf32> to vector<8x64xf32>
    %197 = vector.extract_strided_slice %195 {offsets = [0, 64], sizes = [8, 64], strides = [1, 1]} : vector<8x256xf32> to vector<8x64xf32>
    %198 = vector.extract_strided_slice %195 {offsets = [0, 128], sizes = [8, 64], strides = [1, 1]} : vector<8x256xf32> to vector<8x64xf32>
    %199 = vector.extract_strided_slice %195 {offsets = [0, 192], sizes = [8, 64], strides = [1, 1]} : vector<8x256xf32> to vector<8x64xf32>
    %200 = arith.mulf %197, %164 : vector<8x64xf32>
    %201 = arith.mulf %196, %199 : vector<8x64xf32>
    %202 = arith.addf %200, %201 : vector<8x64xf32>
    %203 = math.tanh %202 : vector<8x64xf32>
    %204 = arith.mulf %198, %203 : vector<8x64xf32>
    %205 = vector.extract_strided_slice %5 {offsets = [40, 0], sizes = [8, 256], strides = [1, 1]} : vector<64x256xf32> to vector<8x256xf32>
    %cst_32 = arith.constant dense<0.000000e+00> : vector<8x256xf32>
    %206 = tpu.matmul %185, %6, %cst_32 {dimension_numbers = #tpu.dot_dimension_numbers<[1], [0], [0], [1], [0, 0, 1, 1], [], []>} : vector<8x64xf32>, vector<64x256xf32>, vector<8x256xf32> -> vector<8x256xf32>
    %207 = arith.addf %205, %206 : vector<8x256xf32>
    %208 = arith.negf %207 : vector<8x256xf32>
    %209 = math.exp %208 : vector<8x256xf32>
    %cst_33 = arith.constant 1.000000e+00 : f32
    %210 = vector.broadcast %cst_33 : f32 to vector<8x256xf32>
    %211 = arith.addf %210, %209 : vector<8x256xf32>
    %212 = arith.divf %210, %211 : vector<8x256xf32>
    %213 = math.tanh %207 : vector<8x256xf32>
    %214 = arith.select %13, %212, %213 : vector<8x256xi1>, vector<8x256xf32>
    %215 = vector.extract_strided_slice %214 {offsets = [0, 0], sizes = [8, 64], strides = [1, 1]} : vector<8x256xf32> to vector<8x64xf32>
    %216 = vector.extract_strided_slice %214 {offsets = [0, 64], sizes = [8, 64], strides = [1, 1]} : vector<8x256xf32> to vector<8x64xf32>
    %217 = vector.extract_strided_slice %214 {offsets = [0, 128], sizes = [8, 64], strides = [1, 1]} : vector<8x256xf32> to vector<8x64xf32>
    %218 = vector.extract_strided_slice %214 {offsets = [0, 192], sizes = [8, 64], strides = [1, 1]} : vector<8x256xf32> to vector<8x64xf32>
    %219 = arith.mulf %216, %183 : vector<8x64xf32>
    %220 = arith.mulf %215, %218 : vector<8x64xf32>
    %221 = arith.addf %219, %220 : vector<8x64xf32>
    %222 = math.tanh %221 : vector<8x64xf32>
    %223 = arith.mulf %217, %222 : vector<8x64xf32>
    %224 = tpu.concatenate %223, %204 in 1 : vector<8x64xf32>, vector<8x64xf32> -> vector<8x128xf32>
    %cst_34 = arith.constant dense<0.000000e+00> : vector<8x256xf32>
    %225 = tpu.matmul %224, %7, %cst_34 {dimension_numbers = #tpu.dot_dimension_numbers<[1], [0], [0], [1], [0, 0, 1, 1], [], []>} : vector<8x128xf32>, vector<128x256xf32>, vector<8x256xf32> -> vector<8x256xf32>
    %226 = arith.addf %225, %10 : vector<8x256xf32>
    %227 = arith.negf %226 : vector<8x256xf32>
    %228 = math.exp %227 : vector<8x256xf32>
    %cst_35 = arith.constant 1.000000e+00 : f32
    %229 = vector.broadcast %cst_35 : f32 to vector<8x256xf32>
    %230 = arith.addf %229, %228 : vector<8x256xf32>
    %231 = arith.divf %229, %230 : vector<8x256xf32>
    %232 = math.tanh %226 : vector<8x256xf32>
    %233 = arith.select %13, %231, %232 : vector<8x256xi1>, vector<8x256xf32>
    %234 = vector.extract_strided_slice %233 {offsets = [0, 0], sizes = [8, 64], strides = [1, 1]} : vector<8x256xf32> to vector<8x64xf32>
    %235 = vector.extract_strided_slice %233 {offsets = [0, 64], sizes = [8, 64], strides = [1, 1]} : vector<8x256xf32> to vector<8x64xf32>
    %236 = vector.extract_strided_slice %233 {offsets = [0, 128], sizes = [8, 64], strides = [1, 1]} : vector<8x256xf32> to vector<8x64xf32>
    %237 = vector.extract_strided_slice %233 {offsets = [0, 192], sizes = [8, 64], strides = [1, 1]} : vector<8x256xf32> to vector<8x64xf32>
    %238 = arith.mulf %235, %202 : vector<8x64xf32>
    %239 = arith.mulf %234, %237 : vector<8x64xf32>
    %240 = arith.addf %238, %239 : vector<8x64xf32>
    %241 = math.tanh %240 : vector<8x64xf32>
    %242 = arith.mulf %236, %241 : vector<8x64xf32>
    %243 = vector.extract_strided_slice %5 {offsets = [48, 0], sizes = [8, 256], strides = [1, 1]} : vector<64x256xf32> to vector<8x256xf32>
    %cst_36 = arith.constant dense<0.000000e+00> : vector<8x256xf32>
    %244 = tpu.matmul %223, %6, %cst_36 {dimension_numbers = #tpu.dot_dimension_numbers<[1], [0], [0], [1], [0, 0, 1, 1], [], []>} : vector<8x64xf32>, vector<64x256xf32>, vector<8x256xf32> -> vector<8x256xf32>
    %245 = arith.addf %243, %244 : vector<8x256xf32>
    %246 = arith.negf %245 : vector<8x256xf32>
    %247 = math.exp %246 : vector<8x256xf32>
    %cst_37 = arith.constant 1.000000e+00 : f32
    %248 = vector.broadcast %cst_37 : f32 to vector<8x256xf32>
    %249 = arith.addf %248, %247 : vector<8x256xf32>
    %250 = arith.divf %248, %249 : vector<8x256xf32>
    %251 = math.tanh %245 : vector<8x256xf32>
    %252 = arith.select %13, %250, %251 : vector<8x256xi1>, vector<8x256xf32>
    %253 = vector.extract_strided_slice %252 {offsets = [0, 0], sizes = [8, 64], strides = [1, 1]} : vector<8x256xf32> to vector<8x64xf32>
    %254 = vector.extract_strided_slice %252 {offsets = [0, 64], sizes = [8, 64], strides = [1, 1]} : vector<8x256xf32> to vector<8x64xf32>
    %255 = vector.extract_strided_slice %252 {offsets = [0, 128], sizes = [8, 64], strides = [1, 1]} : vector<8x256xf32> to vector<8x64xf32>
    %256 = vector.extract_strided_slice %252 {offsets = [0, 192], sizes = [8, 64], strides = [1, 1]} : vector<8x256xf32> to vector<8x64xf32>
    %257 = arith.mulf %254, %221 : vector<8x64xf32>
    %258 = arith.mulf %253, %256 : vector<8x64xf32>
    %259 = arith.addf %257, %258 : vector<8x64xf32>
    %260 = math.tanh %259 : vector<8x64xf32>
    %261 = arith.mulf %255, %260 : vector<8x64xf32>
    %262 = tpu.concatenate %261, %242 in 1 : vector<8x64xf32>, vector<8x64xf32> -> vector<8x128xf32>
    %cst_38 = arith.constant dense<0.000000e+00> : vector<8x256xf32>
    %263 = tpu.matmul %262, %7, %cst_38 {dimension_numbers = #tpu.dot_dimension_numbers<[1], [0], [0], [1], [0, 0, 1, 1], [], []>} : vector<8x128xf32>, vector<128x256xf32>, vector<8x256xf32> -> vector<8x256xf32>
    %264 = arith.addf %263, %10 : vector<8x256xf32>
    %265 = arith.negf %264 : vector<8x256xf32>
    %266 = math.exp %265 : vector<8x256xf32>
    %cst_39 = arith.constant 1.000000e+00 : f32
    %267 = vector.broadcast %cst_39 : f32 to vector<8x256xf32>
    %268 = arith.addf %267, %266 : vector<8x256xf32>
    %269 = arith.divf %267, %268 : vector<8x256xf32>
    %270 = math.tanh %264 : vector<8x256xf32>
    %271 = arith.select %13, %269, %270 : vector<8x256xi1>, vector<8x256xf32>
    %272 = vector.extract_strided_slice %271 {offsets = [0, 0], sizes = [8, 64], strides = [1, 1]} : vector<8x256xf32> to vector<8x64xf32>
    %273 = vector.extract_strided_slice %271 {offsets = [0, 64], sizes = [8, 64], strides = [1, 1]} : vector<8x256xf32> to vector<8x64xf32>
    %274 = vector.extract_strided_slice %271 {offsets = [0, 128], sizes = [8, 64], strides = [1, 1]} : vector<8x256xf32> to vector<8x64xf32>
    %275 = vector.extract_strided_slice %271 {offsets = [0, 192], sizes = [8, 64], strides = [1, 1]} : vector<8x256xf32> to vector<8x64xf32>
    %276 = arith.mulf %273, %240 : vector<8x64xf32>
    %277 = arith.mulf %272, %275 : vector<8x64xf32>
    %278 = arith.addf %276, %277 : vector<8x64xf32>
    %279 = math.tanh %278 : vector<8x64xf32>
    %280 = arith.mulf %274, %279 : vector<8x64xf32>
    %281 = vector.extract_strided_slice %5 {offsets = [56, 0], sizes = [8, 256], strides = [1, 1]} : vector<64x256xf32> to vector<8x256xf32>
    %cst_40 = arith.constant dense<0.000000e+00> : vector<8x256xf32>
    %282 = tpu.matmul %261, %6, %cst_40 {dimension_numbers = #tpu.dot_dimension_numbers<[1], [0], [0], [1], [0, 0, 1, 1], [], []>} : vector<8x64xf32>, vector<64x256xf32>, vector<8x256xf32> -> vector<8x256xf32>
    %283 = arith.addf %281, %282 : vector<8x256xf32>
    %284 = arith.negf %283 : vector<8x256xf32>
    %285 = math.exp %284 : vector<8x256xf32>
    %cst_41 = arith.constant 1.000000e+00 : f32
    %286 = vector.broadcast %cst_41 : f32 to vector<8x256xf32>
    %287 = arith.addf %286, %285 : vector<8x256xf32>
    %288 = arith.divf %286, %287 : vector<8x256xf32>
    %289 = math.tanh %283 : vector<8x256xf32>
    %290 = arith.select %13, %288, %289 : vector<8x256xi1>, vector<8x256xf32>
    %291 = vector.extract_strided_slice %290 {offsets = [0, 0], sizes = [8, 64], strides = [1, 1]} : vector<8x256xf32> to vector<8x64xf32>
    %292 = vector.extract_strided_slice %290 {offsets = [0, 64], sizes = [8, 64], strides = [1, 1]} : vector<8x256xf32> to vector<8x64xf32>
    %293 = vector.extract_strided_slice %290 {offsets = [0, 128], sizes = [8, 64], strides = [1, 1]} : vector<8x256xf32> to vector<8x64xf32>
    %294 = vector.extract_strided_slice %290 {offsets = [0, 192], sizes = [8, 64], strides = [1, 1]} : vector<8x256xf32> to vector<8x64xf32>
    %295 = arith.mulf %292, %259 : vector<8x64xf32>
    %296 = arith.mulf %291, %294 : vector<8x64xf32>
    %297 = arith.addf %295, %296 : vector<8x64xf32>
    %298 = math.tanh %297 : vector<8x64xf32>
    %299 = arith.mulf %293, %298 : vector<8x64xf32>
    %300 = tpu.concatenate %299, %280 in 1 : vector<8x64xf32>, vector<8x64xf32> -> vector<8x128xf32>
    %cst_42 = arith.constant dense<0.000000e+00> : vector<8x256xf32>
    %301 = tpu.matmul %300, %7, %cst_42 {dimension_numbers = #tpu.dot_dimension_numbers<[1], [0], [0], [1], [0, 0, 1, 1], [], []>} : vector<8x128xf32>, vector<128x256xf32>, vector<8x256xf32> -> vector<8x256xf32>
    %302 = arith.addf %301, %10 : vector<8x256xf32>
    %303 = arith.negf %302 : vector<8x256xf32>
    %304 = math.exp %303 : vector<8x256xf32>
    %cst_43 = arith.constant 1.000000e+00 : f32
    %305 = vector.broadcast %cst_43 : f32 to vector<8x256xf32>
    %306 = arith.addf %305, %304 : vector<8x256xf32>
    %307 = arith.divf %305, %306 : vector<8x256xf32>
    %308 = math.tanh %302 : vector<8x256xf32>
    %309 = arith.select %13, %307, %308 : vector<8x256xi1>, vector<8x256xf32>
    %310 = vector.extract_strided_slice %309 {offsets = [0, 0], sizes = [8, 64], strides = [1, 1]} : vector<8x256xf32> to vector<8x64xf32>
    %311 = vector.extract_strided_slice %309 {offsets = [0, 64], sizes = [8, 64], strides = [1, 1]} : vector<8x256xf32> to vector<8x64xf32>
    %312 = vector.extract_strided_slice %309 {offsets = [0, 128], sizes = [8, 64], strides = [1, 1]} : vector<8x256xf32> to vector<8x64xf32>
    %313 = vector.extract_strided_slice %309 {offsets = [0, 192], sizes = [8, 64], strides = [1, 1]} : vector<8x256xf32> to vector<8x64xf32>
    %314 = arith.mulf %311, %278 : vector<8x64xf32>
    %315 = arith.mulf %310, %313 : vector<8x64xf32>
    %316 = arith.addf %314, %315 : vector<8x64xf32>
    %317 = math.tanh %316 : vector<8x64xf32>
    %318 = arith.mulf %312, %317 : vector<8x64xf32>
    %c0_44 = arith.constant 0 : index
    %c0_45 = arith.constant 0 : index
    %319 = vector.load %arg6[%c0_44, %c0_45] : memref<64x128xf32, #tpu.memory_space<vmem>>, vector<64x128xf32>
    %cst_46 = arith.constant dense<0.000000e+00> : vector<8x128xf32>
    %320 = tpu.matmul %318, %319, %cst_46 {dimension_numbers = #tpu.dot_dimension_numbers<[1], [0], [0], [1], [0, 0, 1, 1], [], []>} : vector<8x64xf32>, vector<64x128xf32>, vector<8x128xf32> -> vector<8x128xf32>
    %c0_47 = arith.constant 0 : index
    %c0_48 = arith.constant 0 : index
    %321 = vector.load %arg7[%c0_47, %c0_48] : memref<1x128xf32, #tpu.memory_space<vmem>>, vector<1x128xf32>
    %322 = vector.broadcast %321 : vector<1x128xf32> to vector<8x128xf32>
    %323 = arith.addf %320, %322 : vector<8x128xf32>
    %c0_49 = arith.constant 0 : index
    %c0_50 = arith.constant 0 : index
    %324 = vector.load %arg8[%c0_49, %c0_50] : memref<8x128xf32, #tpu.memory_space<vmem>>, vector<8x128xf32>
    tpu.vector_store %arg8[%c0_49, %c0_50], %323 {strides = array<i32>} : memref<8x128xf32, #tpu.memory_space<vmem>>, vector<8x128xf32>,
    return
  }
}

</mosaic_0001>

<llo_original>
// kernel: ehpi_lstm_forward.1
$region0: #{ehpi_lstm_forward.1}
  #allocation0 [shape = 'u32[]', space=smem, size = 0x4, offset = 0x4, fixed_abs, tag = 'smem constant byte address 0x4 - core index']
  #allocation1 [shape = 'u32[72,128]{1,0:T(1,128)}', space=vmem, size = 0x9000, scoped, tag = 'internal scratch']
  %s0 = inlined_call_operand.vmem [shape: f32[64,36], index: 0, kind: input, shape index: {}]
  %s1 = inlined_call_operand.vmem [shape: f32[36,256], index: 1, kind: input, shape index: {}]
  %s2 = inlined_call_operand.vmem [shape: f32[64,256], index: 2, kind: input, shape index: {}]
  %s3 = inlined_call_operand.vmem [shape: f32[1,256], index: 3, kind: input, shape index: {}]
  %s4 = inlined_call_operand.hbm [shape: f32[128,256], index: 4, kind: input, shape index: {}]
  %s5 = inlined_call_operand.vmem [shape: f32[1,256], index: 5, kind: input, shape index: {}]
  %s6 = inlined_call_operand.vmem [shape: f32[64,128], index: 6, kind: input, shape index: {}]
  %s7 = inlined_call_operand.vmem [shape: f32[1,128], index: 7, kind: input, shape index: {}]
  %s8 = inlined_call_operand.vmem [shape: f32[8,128], index: 8, kind: output, shape index: {}]
  %s9 = sld [smem:[#allocation0]]
  $region46: #{ehpi_lstm_forward.1} parent=0
    _
  %s11 = ssub.s32 1, %s9
  %s12 = scalar_select 0, %s11, %s9
  $region1: #{ehpi_lstm_forward.1} parent=0
    #allocation2 [shape = 'u8[131072]{0}', space=vmem, size = 0x20000, scoped, tag = 'input window, operand 4, single buffered']
    #allocation3 [shape = 's32[1]{0}', space=sflag, size = 0x4, scoped, tag = 'scoped memory for ehpi_lstm_forward.1']
    %13 = vsyncpa [#allocation3], 0
    // Predicated region
    $region2: #{ehpi_lstm_forward.1} parent=1 // pred_check
      _
    $region3: #{ehpi_lstm_forward.1} parent=1 // pred_check_branch
      %15 = sbr.rel (0) target = $region5
    $region4: #{ehpi_lstm_forward.1} parent=1 // pred_region
      _
    $region5: #{ehpi_lstm_forward.1} parent=1 // pred_fallthru
      _
    // Predicated region
    $region6: #{ehpi_lstm_forward.1} parent=1 // pred_check
      _
    $region7: #{ehpi_lstm_forward.1} parent=1 // pred_check_branch
      %17 = sbr.rel (0) target = $region9
    $region8: #{ehpi_lstm_forward.1} parent=1 // pred_region
      _
    $region9: #{ehpi_lstm_forward.1} parent=1 // pred_fallthru
      _
    // Predicated region
    $region10: #{ehpi_lstm_forward.1} parent=1 // pred_check
      _
    $region11: #{ehpi_lstm_forward.1} parent=1 // pred_check_branch
      %19 = sbr.rel (0) target = $region13
    $region12: #{ehpi_lstm_forward.1} parent=1 // pred_region
      _
    $region13: #{ehpi_lstm_forward.1} parent=1 // pred_fallthru
      _
    // Predicated region
    $region14: #{ehpi_lstm_forward.1} parent=1 // pred_check
      _
    $region15: #{ehpi_lstm_forward.1} parent=1 // pred_check_branch
      %21 = sbr.rel (0) target = $region17
    $region16: #{ehpi_lstm_forward.1} parent=1 // pred_region
      _
    $region17: #{ehpi_lstm_forward.1} parent=1 // pred_fallthru
      _
    // Predicated region
    $region18: #{ehpi_lstm_forward.1} parent=1 // pred_check
      _
    $region19: #{ehpi_lstm_forward.1} parent=1 // pred_check_branch
      %23 = sbr.rel (0) target = $region21
    $region20: #{ehpi_lstm_forward.1} parent=1 // pred_region
      %25 = vsyncadd [#allocation3], 0
      %s26 = sshll.u32 %s4, 4
      %s27 = int_to_ptr.hbm [resolvable:$true] %s26
      %s28 = sshll.u32 [#allocation2], 4
      %s29 = int_to_ptr.vmem [resolvable:$true] %s28
      %34 = dma.hbm_to_vmem [thread:$0]  %s27, 4096, %s29, [#allocation3], 256, 256, 16
    $region21: #{ehpi_lstm_forward.1} parent=1 // pred_fallthru
      _
    // Predicated region
    $region22: #{ehpi_lstm_forward.1} parent=1 // pred_check
      _
    $region23: #{ehpi_lstm_forward.1} parent=1 // pred_check_branch
      %36 = sbr.rel (0) target = $region25
    $region24: #{ehpi_lstm_forward.1} parent=1 // pred_region
      _
    $region25: #{ehpi_lstm_forward.1} parent=1 // pred_fallthru
      _
    // Predicated region
    $region26: #{ehpi_lstm_forward.1} parent=1 // pred_check
      _
    $region27: #{ehpi_lstm_forward.1} parent=1 // pred_check_branch
      %38 = sbr.rel (0) target = $region29
    $region28: #{ehpi_lstm_forward.1} parent=1 // pred_region
      _
    $region29: #{ehpi_lstm_forward.1} parent=1 // pred_fallthru
      _
    // Predicated region
    $region30: #{ehpi_lstm_forward.1} parent=1 // pred_check
      _
    $region31: #{ehpi_lstm_forward.1} parent=1 // pred_check_branch
      %40 = sbr.rel (0) target = $region33
    $region32: #{ehpi_lstm_forward.1} parent=1 // pred_region
      _
    $region33: #{ehpi_lstm_forward.1} parent=1 // pred_fallthru
      _
    // Predicated region
    $region34: #{ehpi_lstm_forward.1} parent=1 // pred_check
      _
    $region35: #{ehpi_lstm_forward.1} parent=1 // pred_check_branch
      %42 = sbr.rel (0) target = $region37
    $region36: #{ehpi_lstm_forward.1} parent=1 // pred_region
      %44 = dma.done [#allocation3], 4096
    $region37: #{ehpi_lstm_forward.1} parent=1 // pred_fallthru
      _
    %v45 = vld [vmem:[%s0] sm:$0xff]
    %v46 = vld [vmem:[%s0 + $0x8] sm:$0xff]
    %v47 = vld [vmem:[%s0 + $0x10] sm:$0xff]
    %v48 = vld [vmem:[%s0 + $0x18] sm:$0xff]
    %v49 = vld [vmem:[%s0 + $0x20] sm:$0xff]
    %v50 = vld [vmem:[%s0 + $0x28] sm:$0xff]
    %v51 = vld [vmem:[%s0 + $0x30] sm:$0xff]
    %v52 = vld [vmem:[%s0 + $0x38] sm:$0xff]
    %v53 = vld [vmem:[%s1] sm:$0xff]
    %v54 = vld [vmem:[%s1 + $0x8] sm:$0xff]
    %v55 = vld [vmem:[%s1 + $0x10] sm:$0xff]
    %v56 = vld [vmem:[%s1 + $0x18] sm:$0xff]
    %v57 = vld [vmem:[%s1 + $0x20] sm:$0xff]
    %v58 = vld [vmem:[%s1 + $0x28] sm:$0xff]
    %v59 = vld [vmem:[%s1 + $0x30] sm:$0xff]
    %v60 = vld [vmem:[%s1 + $0x38] sm:$0xff]
    %v61 = vld [vmem:[%s1 + $0x40] sm:$0xf]
    %v62 = vld [vmem:[%s1 + $0x48] sm:$0xf]
    %v63 = vld [vmem:[%s3] sm:$0x3]
    %v65 = vperm.slane %v63, 0
    %v66 = vperm.slane %v63, 1
    %vm69 = vcmask 293888
    %v71 = vsel %vm69, %v45, 0
    %v74 = vsel %vm69, %v46, 0
    %v77 = vsel %vm69, %v47, 0
    %v80 = vsel %vm69, %v48, 0
    %v83 = vsel %vm69, %v49, 0
    %v86 = vsel %vm69, %v50, 0
    %v89 = vsel %vm69, %v51, 0
    %v92 = vsel %vm69, %v52, 0
    %vm94 = vcmask 1043456
    %v96 = vsel %vm94, %v61, 0
    %v99 = vsel %vm94, %v62, 0
    %101 = vmatpush.msra.mxu0 0.0
    %102 = vmatpush.msra.mxu0 0.0
    %103 = vmatpush.msra.mxu0 0.0
    %104 = vmatpush.msra.mxu0 0.0
    %105 = vmatpush.msra.mxu0 0.0
    %106 = vmatpush.msra.mxu0 0.0
    %107 = vmatpush.msra.mxu0 0.0
    %108 = vmatpush.msra.mxu0 0.0
    %109 = vmatpush.msra.mxu0 0.0
    %110 = vmatpush.msra.mxu0 0.0
    %111 = vmatpush.msra.mxu0 0.0
    %112 = vmatpush.msra.mxu0 %v96
    %113 = vmatpush.msra.mxu0 %v59
    %114 = vmatpush.msra.mxu0 %v57
    %115 = vmatpush.msra.mxu0 %v55
    %116 = vmatpush.msra.mxu0 %v53
    %117 = vmatmul.f32.gmra.mxu0 %v71
    %v118 = vpop.f32.mrf.mxu0
    %v119 = vadd.f32 %v65, %v118
    %120 = vmatmul.f32.gmra.mxu0 %v74
    %v121 = vpop.f32.mrf.mxu0
    %v122 = vadd.f32 %v65, %v121
    %123 = vmatmul.f32.gmra.mxu0 %v77
    %v124 = vpop.f32.mrf.mxu0
    %v125 = vadd.f32 %v65, %v124
    %126 = vmatmul.f32.gmra.mxu0 %v80
    %v127 = vpop.f32.mrf.mxu0
    %v128 = vadd.f32 %v65, %v127
    %129 = vmatmul.f32.gmra.mxu0 %v83
    %v130 = vpop.f32.mrf.mxu0
    %v131 = vadd.f32 %v65, %v130
    %132 = vmatmul.f32.gmra.mxu0 %v86
    %v133 = vpop.f32.mrf.mxu0
    %v134 = vadd.f32 %v65, %v133
    %135 = vmatmul.f32.gmra.mxu0 %v89
    %v136 = vpop.f32.mrf.mxu0
    %v137 = vadd.f32 %v65, %v136
    %138 = vmatmul.f32.gmra.mxu0 %v92
    %v139 = vpop.f32.mrf.mxu0
    %v140 = vadd.f32 %v65, %v139
    %141 = vdwg.mxu0
    %142 = vmatpush.msra.mxu0 0.0
    %143 = vmatpush.msra.mxu0 0.0
    %144 = vmatpush.msra.mxu0 0.0
    %145 = vmatpush.msra.mxu0 0.0
    %146 = vmatpush.msra.mxu0 0.0
    %147 = vmatpush.msra.mxu0 0.0
    %148 = vmatpush.msra.mxu0 0.0
    %149 = vmatpush.msra.mxu0 0.0
    %150 = vmatpush.msra.mxu0 0.0
    %151 = vmatpush.msra.mxu0 0.0
    %152 = vmatpush.msra.mxu0 0.0
    %153 = vmatpush.msra.mxu0 %v99
    %154 = vmatpush.msra.mxu0 %v60
    %155 = vmatpush.msra.mxu0 %v58
    %156 = vmatpush.msra.mxu0 %v56
    %157 = vmatpush.msra.mxu0 %v54
    %158 = vmatmul.f32.gmra.mxu0 %v71
    %v159 = vpop.f32.mrf.mxu0
    %v160 = vadd.f32 %v66, %v159
    %161 = vmatmul.f32.gmra.mxu0 %v74
    %v162 = vpop.f32.mrf.mxu0
    %v163 = vadd.f32 %v66, %v162
    %164 = vmatmul.f32.gmra.mxu0 %v77
    %v165 = vpop.f32.mrf.mxu0
    %v166 = vadd.f32 %v66, %v165
    %167 = vmatmul.f32.gmra.mxu0 %v80
    %v168 = vpop.f32.mrf.mxu0
    %v169 = vadd.f32 %v66, %v168
    %170 = vmatmul.f32.gmra.mxu0 %v83
    %v171 = vpop.f32.mrf.mxu0
    %v172 = vadd.f32 %v66, %v171
    %173 = vmatmul.f32.gmra.mxu0 %v86
    %v174 = vpop.f32.mrf.mxu0
    %v175 = vadd.f32 %v66, %v174
    %176 = vmatmul.f32.gmra.mxu0 %v89
    %v177 = vpop.f32.mrf.mxu0
    %v178 = vadd.f32 %v66, %v177
    %179 = vmatmul.f32.gmra.mxu0 %v92
    %v180 = vpop.f32.mrf.mxu0
    %v181 = vadd.f32 %v66, %v180
    %182 = vdwg.mxu0
    %v183 = vld [vmem:[%s2] sm:$0xff]
    %v184 = vld [vmem:[%s2 + $0x8] sm:$0xff]
    %v185 = vld [vmem:[%s2 + $0x10] sm:$0xff]
    %v186 = vld [vmem:[%s2 + $0x18] sm:$0xff]
    %v187 = vld [vmem:[%s2 + $0x20] sm:$0xff]
    %v188 = vld [vmem:[%s2 + $0x28] sm:$0xff]
    %v189 = vld [vmem:[%s2 + $0x30] sm:$0xff]
    %v190 = vld [vmem:[%s2 + $0x38] sm:$0xff]
    %v191 = vld [vmem:[%s2 + $0x40] sm:$0xff]
    %v192 = vld [vmem:[%s2 + $0x48] sm:$0xff]
    %v193 = vld [vmem:[%s2 + $0x50] sm:$0xff]
    %v194 = vld [vmem:[%s2 + $0x58] sm:$0xff]
    %v195 = vld [vmem:[%s2 + $0x60] sm:$0xff]
    %v196 = vld [vmem:[%s2 + $0x68] sm:$0xff]
    %v197 = vld [vmem:[%s2 + $0x70] sm:$0xff]
    %v198 = vld [vmem:[%s2 + $0x78] sm:$0xff]
    %v199 = vld [vmem:[#allocation2] sm:$0xff]
    %v200 = vld [vmem:[#allocation2 + $0x8] sm:$0xff]
    %v201 = vld [vmem:[#allocation2 + $0x10] sm:$0xff]
    %v202 = vld [vmem:[#allocation2 + $0x18] sm:$0xff]
    %v203 = vld [vmem:[#allocation2 + $0x20] sm:$0xff]
    %v204 = vld [vmem:[#allocation2 + $0x28] sm:$0xff]
    %v205 = vld [vmem:[#allocation2 + $0x30] sm:$0xff]
    %v206 = vld [vmem:[#allocation2 + $0x38] sm:$0xff]
    %v207 = vld [vmem:[#allocation2 + $0x40] sm:$0xff]
    %v208 = vld [vmem:[#allocation2 + $0x48] sm:$0xff]
    %v209 = vld [vmem:[#allocation2 + $0x50] sm:$0xff]
    %v210 = vld [vmem:[#allocation2 + $0x58] sm:$0xff]
    %v211 = vld [vmem:[#allocation2 + $0x60] sm:$0xff]
    %v212 = vld [vmem:[#allocation2 + $0x68] sm:$0xff]
    %v213 = vld [vmem:[#allocation2 + $0x70] sm:$0xff]
    %v214 = vld [vmem:[#allocation2 + $0x78] sm:$0xff]
    %v215 = vld [vmem:[#allocation2 + $0x80] sm:$0xff]
    %v216 = vld [vmem:[#allocation2 + $0x88] sm:$0xff]
    %v217 = vld [vmem:[#allocation2 + $0x90] sm:$0xff]
    %v218 = vld [vmem:[#allocation2 + $0x98] sm:$0xff]
    %v219 = vld [vmem:[#allocation2 + $0xa0] sm:$0xff]
    %v220 = vld [vmem:[#allocation2 + $0xa8] sm:$0xff]
    %v221 = vld [vmem:[#allocation2 + $0xb0] sm:$0xff]
    %v222 = vld [vmem:[#allocation2 + $0xb8] sm:$0xff]
    %v223 = vld [vmem:[#allocation2 + $0xc0] sm:$0xff]
    %v224 = vld [vmem:[#allocation2 + $0xc8] sm:$0xff]
    %v225 = vld [vmem:[#allocation2 + $0xd0] sm:$0xff]
    %v226 = vld [vmem:[#allocation2 + $0xd8] sm:$0xff]
    %v227 = vld [vmem:[#allocation2 + $0xe0] sm:$0xff]
    %v228 = vld [vmem:[#allocation2 + $0xe8] sm:$0xff]
    %v229 = vld [vmem:[#allocation2 + $0xf0] sm:$0xff]
    %v230 = vld [vmem:[#allocation2 + $0xf8] sm:$0xff]
    %v231 = vld [vmem:[%s5] sm:$0x3]
    %v233 = vperm.slane %v231, 0
    %v234 = vperm.slane %v231, 1
    %v237 = vlaneseq
    %v238 = vand.u32 %v237, 127
    %v239 = vadd.s32 %v238, 128
    %vm240 = vcmp.lt.s32.totalorder %v238, 192
    %vm241 = vcmp.lt.s32.totalorder %v239, 192
    %vm242 = vcmask 523264
    %v244 = vsel %vm242, 0.0, 0
    %246 = vmatpush.msra.mxu0 0.0
    %247 = vmatpush.msra.mxu0 0.0
    %248 = vmatpush.msra.mxu0 0.0
    %249 = vmatpush.msra.mxu0 0.0
    %250 = vmatpush.msra.mxu0 0.0
    %251 = vmatpush.msra.mxu0 0.0
    %252 = vmatpush.msra.mxu0 0.0
    %253 = vmatpush.msra.mxu0 0.0
    %254 = vmatpush.msra.mxu0 %v197
    %255 = vmatpush.msra.mxu0 %v195
    %256 = vmatpush.msra.mxu0 %v193
    %257 = vmatpush.msra.mxu0 %v191
    %258 = vmatpush.msra.mxu0 %v189
    %259 = vmatpush.msra.mxu0 %v187
    %260 = vmatpush.msra.mxu0 %v185
    %261 = vmatpush.msra.mxu0 %v183
    %262 = vmatmul.f32.gmra.mxu0 %v244
    %v263 = vpop.f32.mrf.mxu0
    %v264 = vadd.f32 0.0, %v263
    %265 = vdwg.mxu0
    %266 = vmatpush.msra.mxu0 0.0
    %267 = vmatpush.msra.mxu0 0.0
    %268 = vmatpush.msra.mxu0 0.0
    %269 = vmatpush.msra.mxu0 0.0
    %270 = vmatpush.msra.mxu0 0.0
    %271 = vmatpush.msra.mxu0 0.0
    %272 = vmatpush.msra.mxu0 0.0
    %273 = vmatpush.msra.mxu0 0.0
    %274 = vmatpush.msra.mxu0 %v198
    %275 = vmatpush.msra.mxu0 %v196
    %276 = vmatpush.msra.mxu0 %v194
    %277 = vmatpush.msra.mxu0 %v192
    %278 = vmatpush.msra.mxu0 %v190
    %279 = vmatpush.msra.mxu0 %v188
    %280 = vmatpush.msra.mxu0 %v186
    %281 = vmatpush.msra.mxu0 %v184
    %282 = vmatmul.f32.gmra.mxu0 %v244
    %v283 = vpop.f32.mrf.mxu0
    %v284 = vadd.f32 0.0, %v283
    %285 = vdwg.mxu0
    %v286 = vadd.f32 %v119, %v264
    %v287 = vadd.f32 %v160, %v284
    %v288 = vxor.u32 %v286, 2147483648
    %v289 = vxor.u32 %v287, 2147483648
    %v290 = vmul.f32 %v288, 1.442695
    %v291 = vpow.pop %v290
    %v292 = vmul.f32 %v289, 1.442695
    %v293 = vpow.pop %v292
    %v294 = vadd.f32 %v291, 1.0
    %v295 = vadd.f32 %v293, 1.0
    %v296 = vrcp.pop %v294
    %v297 = vmul.f32 %v294, %v296
    %v298 = vsub.f32 1.0, %v297
    %v299 = vmul.f32 %v296, %v298
    %v300 = vadd.f32 %v296, %v299
    %vm301 = vweird.f32 %v294
    %vm302 = vweird.f32 %v296
    %vm303 = vmor %vm301, %vm302
    %v304 = vsel %vm303, %v296, %v300
    %v305 = vand.u32 2147483647, %v294
    %vm306 = vcmp.eq.f32.partialorder %v305, 8.507059e+37
    %v307 = vand.u32 %v294, 2147483648
    %v308 = vor.u32 1.1754944e-38, %v307
    %v309 = vsel %vm306, %v308, %v304
    %v310 = vmul.f32 1.0, %v309
    %v311 = vrcp.pop %v295
    %v312 = vmul.f32 %v295, %v311
    %v313 = vsub.f32 1.0, %v312
    %v314 = vmul.f32 %v311, %v313
    %v315 = vadd.f32 %v311, %v314
    %vm316 = vweird.f32 %v295
    %vm317 = vweird.f32 %v311
    %vm318 = vmor %vm316, %vm317
    %v319 = vsel %vm318, %v311, %v315
    %v320 = vand.u32 2147483647, %v295
    %vm321 = vcmp.eq.f32.partialorder %v320, 8.507059e+37
    %v322 = vand.u32 %v295, 2147483648
    %v323 = vor.u32 1.1754944e-38, %v322
    %v324 = vsel %vm321, %v323, %v319
    %v325 = vmul.f32 1.0, %v324
    %v326 = vtanh.pop %v286
    %v327 = vtanh.pop %v287
    %v328 = vsel %vm240, %v310, %v326
    %v329 = vsel %vm241, %v325, %v327
    %v330 = vmul.f32 %v328, 0.0
    %332 = vrot.lane.b32.xlu0 %v329, 64
    %v333 = vpop.permute.xlu0 %332
    %v335 = vmul.f32 %v328, %v333
    %337 = vrot.lane.b32.xlu0 %v335, 64
    %v338 = vpop.permute.xlu0 %337
    %v340 = vadd.f32 %v330, %v338
    %v341 = vtanh.pop %v340
    %343 = vrot.lane.b32.xlu0 %v341, 64
    %v344 = vpop.permute.xlu0 %343
    %v346 = vmul.f32 %v329, %v344
    %v347 = vsel %vm242, %v346, 0.0
    %348 = vmatpush.msra.mxu0 %v229
    %349 = vmatpush.msra.mxu0 %v227
    %350 = vmatpush.msra.mxu0 %v225
    %351 = vmatpush.msra.mxu0 %v223
    %352 = vmatpush.msra.mxu0 %v221
    %353 = vmatpush.msra.mxu0 %v219
    %354 = vmatpush.msra.mxu0 %v217
    %355 = vmatpush.msra.mxu0 %v215
    %356 = vmatpush.msra.mxu0 %v213
    %357 = vmatpush.msra.mxu0 %v211
    %358 = vmatpush.msra.mxu0 %v209
    %359 = vmatpush.msra.mxu0 %v207
    %360 = vmatpush.msra.mxu0 %v205
    %361 = vmatpush.msra.mxu0 %v203
    %362 = vmatpush.msra.mxu0 %v201
    %363 = vmatpush.msra.mxu0 %v199
    %364 = vmatmul.f32.gmra.mxu0 %v347
    %v365 = vpop.f32.mrf.mxu0
    %v366 = vadd.f32 %v233, %v365
    %367 = vdwg.mxu0
    %368 = vmatpush.msra.mxu0 %v230
    %369 = vmatpush.msra.mxu0 %v228
    %370 = vmatpush.msra.mxu0 %v226
    %371 = vmatpush.msra.mxu0 %v224
    %372 = vmatpush.msra.mxu0 %v222
    %373 = vmatpush.msra.mxu0 %v220
    %374 = vmatpush.msra.mxu0 %v218
    %375 = vmatpush.msra.mxu0 %v216
    %376 = vmatpush.msra.mxu0 %v214
    %377 = vmatpush.msra.mxu0 %v212
    %378 = vmatpush.msra.mxu0 %v210
    %379 = vmatpush.msra.mxu0 %v208
    %380 = vmatpush.msra.mxu0 %v206
    %381 = vmatpush.msra.mxu0 %v204
    %382 = vmatpush.msra.mxu0 %v202
    %383 = vmatpush.msra.mxu0 %v200
    %384 = vmatmul.f32.gmra.mxu0 %v347
    %v385 = vpop.f32.mrf.mxu0
    %v386 = vadd.f32 %v234, %v385
    %387 = vdwg.mxu0
    %v388 = vxor.u32 %v366, 2147483648
    %v389 = vxor.u32 %v386, 2147483648
    %v390 = vmul.f32 %v388, 1.442695
    %v391 = vpow.pop %v390
    %v392 = vmul.f32 %v389, 1.442695
    %v393 = vpow.pop %v392
    %v394 = vadd.f32 %v391, 1.0
    %v395 = vadd.f32 %v393, 1.0
    %v396 = vrcp.pop %v394
    %v397 = vmul.f32 %v394, %v396
    %v398 = vsub.f32 1.0, %v397
    %v399 = vmul.f32 %v396, %v398
    %v400 = vadd.f32 %v396, %v399
    %vm401 = vweird.f32 %v394
    %vm402 = vweird.f32 %v396
    %vm403 = vmor %vm401, %vm402
    %v404 = vsel %vm403, %v396, %v400
    %v405 = vand.u32 2147483647, %v394
    %vm406 = vcmp.eq.f32.partialorder %v405, 8.507059e+37
    %v407 = vand.u32 %v394, 2147483648
    %v408 = vor.u32 1.1754944e-38, %v407
    %v409 = vsel %vm406, %v408, %v404
    %v410 = vmul.f32 1.0, %v409
    %v411 = vrcp.pop %v395
    %v412 = vmul.f32 %v395, %v411
    %v413 = vsub.f32 1.0, %v412
    %v414 = vmul.f32 %v411, %v413
    %v415 = vadd.f32 %v411, %v414
    %vm416 = vweird.f32 %v395
    %vm417 = vweird.f32 %v411
    %vm418 = vmor %vm416, %vm417
    %v419 = vsel %vm418, %v411, %v415
    %v420 = vand.u32 2147483647, %v395
    %vm421 = vcmp.eq.f32.partialorder %v420, 8.507059e+37
    %v422 = vand.u32 %v395, 2147483648
    %v423 = vor.u32 1.1754944e-38, %v422
    %v424 = vsel %vm421, %v423, %v419
    %v425 = vmul.f32 1.0, %v424
    %v426 = vtanh.pop %v366
    %v427 = vtanh.pop %v386
    %v428 = vsel %vm240, %v410, %v426
    %v429 = vsel %vm241, %v425, %v427
    %v430 = vmul.f32 %v428, 0.0
    %432 = vrot.lane.b32.xlu0 %v429, 64
    %v433 = vpop.permute.xlu0 %432
    %v435 = vmul.f32 %v428, %v433
    %437 = vrot.lane.b32.xlu0 %v435, 64
    %v438 = vpop.permute.xlu0 %437
    %v440 = vadd.f32 %v430, %v438
    %v441 = vtanh.pop %v440
    %443 = vrot.lane.b32.xlu0 %v441, 64
    %v444 = vpop.permute.xlu0 %443
    %v446 = vmul.f32 %v429, %v444
    %v448 = vsel %vm242, %v346, 0
    %450 = vmatpush.msra.mxu0 0.0
    %451 = vmatpush.msra.mxu0 0.0
    %452 = vmatpush.msra.mxu0 0.0
    %453 = vmatpush.msra.mxu0 0.0
    %454 = vmatpush.msra.mxu0 0.0
    %455 = vmatpush.msra.mxu0 0.0
    %456 = vmatpush.msra.mxu0 0.0
    %457 = vmatpush.msra.mxu0 0.0
    %458 = vmatpush.msra.mxu0 %v197
    %459 = vmatpush.msra.mxu0 %v195
    %460 = vmatpush.msra.mxu0 %v193
    %461 = vmatpush.msra.mxu0 %v191
    %462 = vmatpush.msra.mxu0 %v189
    %463 = vmatpush.msra.mxu0 %v187
    %464 = vmatpush.msra.mxu0 %v185
    %465 = vmatpush.msra.mxu0 %v183
    %466 = vmatmul.f32.gmra.mxu0 %v448
    %v467 = vpop.f32.mrf.mxu0
    %v468 = vadd.f32 0.0, %v467
    %469 = vdwg.mxu0
    %470 = vmatpush.msra.mxu0 0.0
    %471 = vmatpush.msra.mxu0 0.0
    %472 = vmatpush.msra.mxu0 0.0
    %473 = vmatpush.msra.mxu0 0.0
    %474 = vmatpush.msra.mxu0 0.0
    %475 = vmatpush.msra.mxu0 0.0
    %476 = vmatpush.msra.mxu0 0.0
    %477 = vmatpush.msra.mxu0 0.0
    %478 = vmatpush.msra.mxu0 %v198
    %479 = vmatpush.msra.mxu0 %v196
    %480 = vmatpush.msra.mxu0 %v194
    %481 = vmatpush.msra.mxu0 %v192
    %482 = vmatpush.msra.mxu0 %v190
    %483 = vmatpush.msra.mxu0 %v188
    %484 = vmatpush.msra.mxu0 %v186
    %485 = vmatpush.msra.mxu0 %v184
    %486 = vmatmul.f32.gmra.mxu0 %v448
    %v487 = vpop.f32.mrf.mxu0
    %v488 = vadd.f32 0.0, %v487
    %489 = vdwg.mxu0
    %v490 = vadd.f32 %v122, %v468
    %v491 = vadd.f32 %v163, %v488
    %v492 = vxor.u32 %v490, 2147483648
    %v493 = vxor.u32 %v491, 2147483648
    %v494 = vmul.f32 %v492, 1.442695
    %v495 = vpow.pop %v494
    %v496 = vmul.f32 %v493, 1.442695
    %v497 = vpow.pop %v496
    %v498 = vadd.f32 %v495, 1.0
    %v499 = vadd.f32 %v497, 1.0
    %v500 = vrcp.pop %v498
    %v501 = vmul.f32 %v498, %v500
    %v502 = vsub.f32 1.0, %v501
    %v503 = vmul.f32 %v500, %v502
    %v504 = vadd.f32 %v500, %v503
    %vm505 = vweird.f32 %v498
    %vm506 = vweird.f32 %v500
    %vm507 = vmor %vm505, %vm506
    %v508 = vsel %vm507, %v500, %v504
    %v509 = vand.u32 2147483647, %v498
    %vm510 = vcmp.eq.f32.partialorder %v509, 8.507059e+37
    %v511 = vand.u32 %v498, 2147483648
    %v512 = vor.u32 1.1754944e-38, %v511
    %v513 = vsel %vm510, %v512, %v508
    %v514 = vmul.f32 1.0, %v513
    %v515 = vrcp.pop %v499
    %v516 = vmul.f32 %v499, %v515
    %v517 = vsub.f32 1.0, %v516
    %v518 = vmul.f32 %v515, %v517
    %v519 = vadd.f32 %v515, %v518
    %vm520 = vweird.f32 %v499
    %vm521 = vweird.f32 %v515
    %vm522 = vmor %vm520, %vm521
    %v523 = vsel %vm522, %v515, %v519
    %v524 = vand.u32 2147483647, %v499
    %vm525 = vcmp.eq.f32.partialorder %v524, 8.507059e+37
    %v526 = vand.u32 %v499, 2147483648
    %v527 = vor.u32 1.1754944e-38, %v526
    %v528 = vsel %vm525, %v527, %v523
    %v529 = vmul.f32 1.0, %v528
    %v530 = vtanh.pop %v490
    %v531 = vtanh.pop %v491
    %v532 = vsel %vm240, %v514, %v530
    %v533 = vsel %vm241, %v529, %v531
    %v534 = vmul.f32 %v532, %v340
    %536 = vrot.lane.b32.xlu0 %v533, 64
    %v537 = vpop.permute.xlu0 %536
    %v539 = vmul.f32 %v532, %v537
    %541 = vrot.lane.b32.xlu0 %v539, 64
    %v542 = vpop.permute.xlu0 %541
    %v544 = vadd.f32 %v534, %v542
    %v545 = vtanh.pop %v544
    %547 = vrot.lane.b32.xlu0 %v545, 64
    %v548 = vpop.permute.xlu0 %547
    %v550 = vmul.f32 %v533, %v548
    %552 = vrot.lane.b32.xlu0 %v446, 64
    %v553 = vpop.permute.xlu0 %552
    %v555 = vsel %vm242, %v550, %v553
    %556 = vmatpush.msra.mxu0 %v229
    %557 = vmatpush.msra.mxu0 %v227
    %558 = vmatpush.msra.mxu0 %v225
    %559 = vmatpush.msra.mxu0 %v223
    %560 = vmatpush.msra.mxu0 %v221
    %561 = vmatpush.msra.mxu0 %v219
    %562 = vmatpush.msra.mxu0 %v217
    %563 = vmatpush.msra.mxu0 %v215
    %564 = vmatpush.msra.mxu0 %v213
    %565 = vmatpush.msra.mxu0 %v211
    %566 = vmatpush.msra.mxu0 %v209
    %567 = vmatpush.msra.mxu0 %v207
    %568 = vmatpush.msra.mxu0 %v205
    %569 = vmatpush.msra.mxu0 %v203
    %570 = vmatpush.msra.mxu0 %v201
    %571 = vmatpush.msra.mxu0 %v199
    %572 = vmatmul.f32.gmra.mxu0 %v555
    %v573 = vpop.f32.mrf.mxu0
    %v574 = vadd.f32 %v233, %v573
    %575 = vdwg.mxu0
    %576 = vmatpush.msra.mxu0 %v230
    %577 = vmatpush.msra.mxu0 %v228
    %578 = vmatpush.msra.mxu0 %v226
    %579 = vmatpush.msra.mxu0 %v224
    %580 = vmatpush.msra.mxu0 %v222
    %581 = vmatpush.msra.mxu0 %v220
    %582 = vmatpush.msra.mxu0 %v218
    %583 = vmatpush.msra.mxu0 %v216
    %584 = vmatpush.msra.mxu0 %v214
    %585 = vmatpush.msra.mxu0 %v212
    %586 = vmatpush.msra.mxu0 %v210
    %587 = vmatpush.msra.mxu0 %v208
    %588 = vmatpush.msra.mxu0 %v206
    %589 = vmatpush.msra.mxu0 %v204
    %590 = vmatpush.msra.mxu0 %v202
    %591 = vmatpush.msra.mxu0 %v200
    %592 = vmatmul.f32.gmra.mxu0 %v555
    %v593 = vpop.f32.mrf.mxu0
    %v594 = vadd.f32 %v234, %v593
    %595 = vdwg.mxu0
    %v596 = vxor.u32 %v574, 2147483648
    %v597 = vxor.u32 %v594, 2147483648
    %v598 = vmul.f32 %v596, 1.442695
    %v599 = vpow.pop %v598
    %v600 = vmul.f32 %v597, 1.442695
    %v601 = vpow.pop %v600
    %v602 = vadd.f32 %v599, 1.0
    %v603 = vadd.f32 %v601, 1.0
    %v604 = vrcp.pop %v602
    %v605 = vmul.f32 %v602, %v604
    %v606 = vsub.f32 1.0, %v605
    %v607 = vmul.f32 %v604, %v606
    %v608 = vadd.f32 %v604, %v607
    %vm609 = vweird.f32 %v602
    %vm610 = vweird.f32 %v604
    %vm611 = vmor %vm609, %vm610
    %v612 = vsel %vm611, %v604, %v608
    %v613 = vand.u32 2147483647, %v602
    %vm614 = vcmp.eq.f32.partialorder %v613, 8.507059e+37
    %v615 = vand.u32 %v602, 2147483648
    %v616 = vor.u32 1.1754944e-38, %v615
    %v617 = vsel %vm614, %v616, %v612
    %v618 = vmul.f32 1.0, %v617
    %v619 = vrcp.pop %v603
    %v620 = vmul.f32 %v603, %v619
    %v621 = vsub.f32 1.0, %v620
    %v622 = vmul.f32 %v619, %v621
    %v623 = vadd.f32 %v619, %v622
    %vm624 = vweird.f32 %v603
    %vm625 = vweird.f32 %v619
    %vm626 = vmor %vm624, %vm625
    %v627 = vsel %vm626, %v619, %v623
    %v628 = vand.u32 2147483647, %v603
    %vm629 = vcmp.eq.f32.partialorder %v628, 8.507059e+37
    %v630 = vand.u32 %v603, 2147483648
    %v631 = vor.u32 1.1754944e-38, %v630
    %v632 = vsel %vm629, %v631, %v627
    %v633 = vmul.f32 1.0, %v632
    %v634 = vtanh.pop %v574
    %v635 = vtanh.pop %v594
    %v636 = vsel %vm240, %v618, %v634
    %v637 = vsel %vm241, %v633, %v635
    %v638 = vmul.f32 %v636, %v440
    %640 = vrot.lane.b32.xlu0 %v637, 64
    %v641 = vpop.permute.xlu0 %640
    %v643 = vmul.f32 %v636, %v641
    %645 = vrot.lane.b32.xlu0 %v643, 64
    %v646 = vpop.permute.xlu0 %645
    %v648 = vadd.f32 %v638, %v646
    %v649 = vtanh.pop %v648
    %651 = vrot.lane.b32.xlu0 %v649, 64
    %v652 = vpop.permute.xlu0 %651
    %v654 = vmul.f32 %v637, %v652
    %v656 = vsel %vm242, %v550, 0
    %658 = vmatpush.msra.mxu0 0.0
    %659 = vmatpush.msra.mxu0 0.0
    %660 = vmatpush.msra.mxu0 0.0
    %661 = vmatpush.msra.mxu0 0.0
    %662 = vmatpush.msra.mxu0 0.0
    %663 = vmatpush.msra.mxu0 0.0
    %664 = vmatpush.msra.mxu0 0.0
    %665 = vmatpush.msra.mxu0 0.0
    %666 = vmatpush.msra.mxu0 %v197
    %667 = vmatpush.msra.mxu0 %v195
    %668 = vmatpush.msra.mxu0 %v193
    %669 = vmatpush.msra.mxu0 %v191
    %670 = vmatpush.msra.mxu0 %v189
    %671 = vmatpush.msra.mxu0 %v187
    %672 = vmatpush.msra.mxu0 %v185
    %673 = vmatpush.msra.mxu0 %v183
    %674 = vmatmul.f32.gmra.mxu0 %v656
    %v675 = vpop.f32.mrf.mxu0
    %v676 = vadd.f32 0.0, %v675
    %677 = vdwg.mxu0
    %678 = vmatpush.msra.mxu0 0.0
    %679 = vmatpush.msra.mxu0 0.0
    %680 = vmatpush.msra.mxu0 0.0
    %681 = vmatpush.msra.mxu0 0.0
    %682 = vmatpush.msra.mxu0 0.0
    %683 = vmatpush.msra.mxu0 0.0
    %684 = vmatpush.msra.mxu0 0.0
    %685 = vmatpush.msra.mxu0 0.0
    %686 = vmatpush.msra.mxu0 %v198
    %687 = vmatpush.msra.mxu0 %v196
    %688 = vmatpush.msra.mxu0 %v194
    %689 = vmatpush.msra.mxu0 %v192
    %690 = vmatpush.msra.mxu0 %v190
    %691 = vmatpush.msra.mxu0 %v188
    %692 = vmatpush.msra.mxu0 %v186
    %693 = vmatpush.msra.mxu0 %v184
    %694 = vmatmul.f32.gmra.mxu0 %v656
    %v695 = vpop.f32.mrf.mxu0
    %v696 = vadd.f32 0.0, %v695
    %697 = vdwg.mxu0
    %v698 = vadd.f32 %v125, %v676
    %v699 = vadd.f32 %v166, %v696
    %v700 = vxor.u32 %v698, 2147483648
    %v701 = vxor.u32 %v699, 2147483648
    %v702 = vmul.f32 %v700, 1.442695
    %v703 = vpow.pop %v702
    %v704 = vmul.f32 %v701, 1.442695
    %v705 = vpow.pop %v704
    %v706 = vadd.f32 %v703, 1.0
    %v707 = vadd.f32 %v705, 1.0
    %v708 = vrcp.pop %v706
    %v709 = vmul.f32 %v706, %v708
    %v710 = vsub.f32 1.0, %v709
    %v711 = vmul.f32 %v708, %v710
    %v712 = vadd.f32 %v708, %v711
    %vm713 = vweird.f32 %v706
    %vm714 = vweird.f32 %v708
    %vm715 = vmor %vm713, %vm714
    %v716 = vsel %vm715, %v708, %v712
    %v717 = vand.u32 2147483647, %v706
    %vm718 = vcmp.eq.f32.partialorder %v717, 8.507059e+37
    %v719 = vand.u32 %v706, 2147483648
    %v720 = vor.u32 1.1754944e-38, %v719
    %v721 = vsel %vm718, %v720, %v716
    %v722 = vmul.f32 1.0, %v721
    %v723 = vrcp.pop %v707
    %v724 = vmul.f32 %v707, %v723
    %v725 = vsub.f32 1.0, %v724
    %v726 = vmul.f32 %v723, %v725
    %v727 = vadd.f32 %v723, %v726
    %vm728 = vweird.f32 %v707
    %vm729 = vweird.f32 %v723
    %vm730 = vmor %vm728, %vm729
    %v731 = vsel %vm730, %v723, %v727
    %v732 = vand.u32 2147483647, %v707
    %vm733 = vcmp.eq.f32.partialorder %v732, 8.507059e+37
    %v734 = vand.u32 %v707, 2147483648
    %v735 = vor.u32 1.1754944e-38, %v734
    %v736 = vsel %vm733, %v735, %v731
    %v737 = vmul.f32 1.0, %v736
    %v738 = vtanh.pop %v698
    %v739 = vtanh.pop %v699
    %v740 = vsel %vm240, %v722, %v738
    %v741 = vsel %vm241, %v737, %v739
    %v742 = vmul.f32 %v740, %v544
    %744 = vrot.lane.b32.xlu0 %v741, 64
    %v745 = vpop.permute.xlu0 %744
    %v747 = vmul.f32 %v740, %v745
    %749 = vrot.lane.b32.xlu0 %v747, 64
    %v750 = vpop.permute.xlu0 %749
    %v752 = vadd.f32 %v742, %v750
    %v753 = vtanh.pop %v752
    %755 = vrot.lane.b32.xlu0 %v753, 64
    %v756 = vpop.permute.xlu0 %755
    %v758 = vmul.f32 %v741, %v756
    %760 = vrot.lane.b32.xlu0 %v654, 64
    %v761 = vpop.permute.xlu0 %760
    %v763 = vsel %vm242, %v758, %v761
    %764 = vmatpush.msra.mxu0 %v229
    %765 = vmatpush.msra.mxu0 %v227
    %766 = vmatpush.msra.mxu0 %v225
    %767 = vmatpush.msra.mxu0 %v223
    %768 = vmatpush.msra.mxu0 %v221
    %769 = vmatpush.msra.mxu0 %v219
    %770 = vmatpush.msra.mxu0 %v217
    %771 = vmatpush.msra.mxu0 %v215
    %772 = vmatpush.msra.mxu0 %v213
    %773 = vmatpush.msra.mxu0 %v211
    %774 = vmatpush.msra.mxu0 %v209
    %775 = vmatpush.msra.mxu0 %v207
    %776 = vmatpush.msra.mxu0 %v205
    %777 = vmatpush.msra.mxu0 %v203
    %778 = vmatpush.msra.mxu0 %v201
    %779 = vmatpush.msra.mxu0 %v199
    %780 = vmatmul.f32.gmra.mxu0 %v763
    %v781 = vpop.f32.mrf.mxu0
    %v782 = vadd.f32 %v233, %v781
    %783 = vdwg.mxu0
    %784 = vmatpush.msra.mxu0 %v230
    %785 = vmatpush.msra.mxu0 %v228
    %786 = vmatpush.msra.mxu0 %v226
    %787 = vmatpush.msra.mxu0 %v224
    %788 = vmatpush.msra.mxu0 %v222
    %789 = vmatpush.msra.mxu0 %v220
    %790 = vmatpush.msra.mxu0 %v218
    %791 = vmatpush.msra.mxu0 %v216
    %792 = vmatpush.msra.mxu0 %v214
    %793 = vmatpush.msra.mxu0 %v212
    %794 = vmatpush.msra.mxu0 %v210
    %795 = vmatpush.msra.mxu0 %v208
    %796 = vmatpush.msra.mxu0 %v206
    %797 = vmatpush.msra.mxu0 %v204
    %798 = vmatpush.msra.mxu0 %v202
    %799 = vmatpush.msra.mxu0 %v200
    %800 = vmatmul.f32.gmra.mxu0 %v763
    %v801 = vpop.f32.mrf.mxu0
    %v802 = vadd.f32 %v234, %v801
    %803 = vdwg.mxu0
    %v804 = vxor.u32 %v782, 2147483648
    %v805 = vxor.u32 %v802, 2147483648
    %v806 = vmul.f32 %v804, 1.442695
    %v807 = vpow.pop %v806
    %v808 = vmul.f32 %v805, 1.442695
    %v809 = vpow.pop %v808
    %v810 = vadd.f32 %v807, 1.0
    %v811 = vadd.f32 %v809, 1.0
    %v812 = vrcp.pop %v810
    %v813 = vmul.f32 %v810, %v812
    %v814 = vsub.f32 1.0, %v813
    %v815 = vmul.f32 %v812, %v814
    %v816 = vadd.f32 %v812, %v815
    %vm817 = vweird.f32 %v810
    %vm818 = vweird.f32 %v812
    %vm819 = vmor %vm817, %vm818
    %v820 = vsel %vm819, %v812, %v816
    %v821 = vand.u32 2147483647, %v810
    %vm822 = vcmp.eq.f32.partialorder %v821, 8.507059e+37
    %v823 = vand.u32 %v810, 2147483648
    %v824 = vor.u32 1.1754944e-38, %v823
    %v825 = vsel %vm822, %v824, %v820
    %v826 = vmul.f32 1.0, %v825
    %v827 = vrcp.pop %v811
    %v828 = vmul.f32 %v811, %v827
    %v829 = vsub.f32 1.0, %v828
    %v830 = vmul.f32 %v827, %v829
    %v831 = vadd.f32 %v827, %v830
    %vm832 = vweird.f32 %v811
    %vm833 = vweird.f32 %v827
    %vm834 = vmor %vm832, %vm833
    %v835 = vsel %vm834, %v827, %v831
    %v836 = vand.u32 2147483647, %v811
    %vm837 = vcmp.eq.f32.partialorder %v836, 8.507059e+37
    %v838 = vand.u32 %v811, 2147483648
    %v839 = vor.u32 1.1754944e-38, %v838
    %v840 = vsel %vm837, %v839, %v835
    %v841 = vmul.f32 1.0, %v840
    %v842 = vtanh.pop %v782
    %v843 = vtanh.pop %v802
    %v844 = vsel %vm240, %v826, %v842
    %v845 = vsel %vm241, %v841, %v843
    %v846 = vmul.f32 %v844, %v648
    %848 = vrot.lane.b32.xlu0 %v845, 64
    %v849 = vpop.permute.xlu0 %848
    %v851 = vmul.f32 %v844, %v849
    %853 = vrot.lane.b32.xlu0 %v851, 64
    %v854 = vpop.permute.xlu0 %853
    %v856 = vadd.f32 %v846, %v854
    %v857 = vtanh.pop %v856
    %859 = vrot.lane.b32.xlu0 %v857, 64
    %v860 = vpop.permute.xlu0 %859
    %v862 = vmul.f32 %v845, %v860
    %v864 = vsel %vm242, %v758, 0
    %866 = vmatpush.msra.mxu0 0.0
    %867 = vmatpush.msra.mxu0 0.0
    %868 = vmatpush.msra.mxu0 0.0
    %869 = vmatpush.msra.mxu0 0.0
    %870 = vmatpush.msra.mxu0 0.0
    %871 = vmatpush.msra.mxu0 0.0
    %872 = vmatpush.msra.mxu0 0.0
    %873 = vmatpush.msra.mxu0 0.0
    %874 = vmatpush.msra.mxu0 %v197
    %875 = vmatpush.msra.mxu0 %v195
    %876 = vmatpush.msra.mxu0 %v193
    %877 = vmatpush.msra.mxu0 %v191
    %878 = vmatpush.msra.mxu0 %v189
    %879 = vmatpush.msra.mxu0 %v187
    %880 = vmatpush.msra.mxu0 %v185
    %881 = vmatpush.msra.mxu0 %v183
    %882 = vmatmul.f32.gmra.mxu0 %v864
    %v883 = vpop.f32.mrf.mxu0
    %v884 = vadd.f32 0.0, %v883
    %885 = vdwg.mxu0
    %886 = vmatpush.msra.mxu0 0.0
    %887 = vmatpush.msra.mxu0 0.0
    %888 = vmatpush.msra.mxu0 0.0
    %889 = vmatpush.msra.mxu0 0.0
    %890 = vmatpush.msra.mxu0 0.0
    %891 = vmatpush.msra.mxu0 0.0
    %892 = vmatpush.msra.mxu0 0.0
    %893 = vmatpush.msra.mxu0 0.0
    %894 = vmatpush.msra.mxu0 %v198
    %895 = vmatpush.msra.mxu0 %v196
    %896 = vmatpush.msra.mxu0 %v194
    %897 = vmatpush.msra.mxu0 %v192
    %898 = vmatpush.msra.mxu0 %v190
    %899 = vmatpush.msra.mxu0 %v188
    %900 = vmatpush.msra.mxu0 %v186
    %901 = vmatpush.msra.mxu0 %v184
    %902 = vmatmul.f32.gmra.mxu0 %v864
    %v903 = vpop.f32.mrf.mxu0
    %v904 = vadd.f32 0.0, %v903
    %905 = vdwg.mxu0
    %v906 = vadd.f32 %v128, %v884
    %v907 = vadd.f32 %v169, %v904
    %v908 = vxor.u32 %v906, 2147483648
    %v909 = vxor.u32 %v907, 2147483648
    %v910 = vmul.f32 %v908, 1.442695
    %v911 = vpow.pop %v910
    %v912 = vmul.f32 %v909, 1.442695
    %v913 = vpow.pop %v912
    %v914 = vadd.f32 %v911, 1.0
    %v915 = vadd.f32 %v913, 1.0
    %v916 = vrcp.pop %v914
    %v917 = vmul.f32 %v914, %v916
    %v918 = vsub.f32 1.0, %v917
    %v919 = vmul.f32 %v916, %v918
    %v920 = vadd.f32 %v916, %v919
    %vm921 = vweird.f32 %v914
    %vm922 = vweird.f32 %v916
    %vm923 = vmor %vm921, %vm922
    %v924 = vsel %vm923, %v916, %v920
    %v925 = vand.u32 2147483647, %v914
    %vm926 = vcmp.eq.f32.partialorder %v925, 8.507059e+37
    %v927 = vand.u32 %v914, 2147483648
    %v928 = vor.u32 1.1754944e-38, %v927
    %v929 = vsel %vm926, %v928, %v924
    %v930 = vmul.f32 1.0, %v929
    %v931 = vrcp.pop %v915
    %v932 = vmul.f32 %v915, %v931
    %v933 = vsub.f32 1.0, %v932
    %v934 = vmul.f32 %v931, %v933
    %v935 = vadd.f32 %v931, %v934
    %vm936 = vweird.f32 %v915
    %vm937 = vweird.f32 %v931
    %vm938 = vmor %vm936, %vm937
    %v939 = vsel %vm938, %v931, %v935
    %v940 = vand.u32 2147483647, %v915
    %vm941 = vcmp.eq.f32.partialorder %v940, 8.507059e+37
    %v942 = vand.u32 %v915, 2147483648
    %v943 = vor.u32 1.1754944e-38, %v942
    %v944 = vsel %vm941, %v943, %v939
    %v945 = vmul.f32 1.0, %v944
    %v946 = vtanh.pop %v906
    %v947 = vtanh.pop %v907
    %v948 = vsel %vm240, %v930, %v946
    %v949 = vsel %vm241, %v945, %v947
    %v950 = vmul.f32 %v948, %v752
    %952 = vrot.lane.b32.xlu0 %v949, 64
    %v953 = vpop.permute.xlu0 %952
    %v955 = vmul.f32 %v948, %v953
    %957 = vrot.lane.b32.xlu0 %v955, 64
    %v958 = vpop.permute.xlu0 %957
    %v960 = vadd.f32 %v950, %v958
    %v961 = vtanh.pop %v960
    %963 = vrot.lane.b32.xlu0 %v961, 64
    %v964 = vpop.permute.xlu0 %963
    %v966 = vmul.f32 %v949, %v964
    %968 = vrot.lane.b32.xlu0 %v862, 64
    %v969 = vpop.permute.xlu0 %968
    %v971 = vsel %vm242, %v966, %v969
    %972 = vmatpush.msra.mxu0 %v229
    %973 = vmatpush.msra.mxu0 %v227
    %974 = vmatpush.msra.mxu0 %v225
    %975 = vmatpush.msra.mxu0 %v223
    %976 = vmatpush.msra.mxu0 %v221
    %977 = vmatpush.msra.mxu0 %v219
    %978 = vmatpush.msra.mxu0 %v217
    %979 = vmatpush.msra.mxu0 %v215
    %980 = vmatpush.msra.mxu0 %v213
    %981 = vmatpush.msra.mxu0 %v211
    %982 = vmatpush.msra.mxu0 %v209
    %983 = vmatpush.msra.mxu0 %v207
    %984 = vmatpush.msra.mxu0 %v205
    %985 = vmatpush.msra.mxu0 %v203
    %986 = vmatpush.msra.mxu0 %v201
    %987 = vmatpush.msra.mxu0 %v199
    %988 = vmatmul.f32.gmra.mxu0 %v971
    %v989 = vpop.f32.mrf.mxu0
    %v990 = vadd.f32 %v233, %v989
    %991 = vdwg.mxu0
    %992 = vmatpush.msra.mxu0 %v230
    %993 = vmatpush.msra.mxu0 %v228
    %994 = vmatpush.msra.mxu0 %v226
    %995 = vmatpush.msra.mxu0 %v224
    %996 = vmatpush.msra.mxu0 %v222
    %997 = vmatpush.msra.mxu0 %v220
    %998 = vmatpush.msra.mxu0 %v218
    %999 = vmatpush.msra.mxu0 %v216
    %1000 = vmatpush.msra.mxu0 %v214
    %1001 = vmatpush.msra.mxu0 %v212
    %1002 = vmatpush.msra.mxu0 %v210
    %1003 = vmatpush.msra.mxu0 %v208
    %1004 = vmatpush.msra.mxu0 %v206
    %1005 = vmatpush.msra.mxu0 %v204
    %1006 = vmatpush.msra.mxu0 %v202
    %1007 = vmatpush.msra.mxu0 %v200
    %1008 = vmatmul.f32.gmra.mxu0 %v971
    %v1009 = vpop.f32.mrf.mxu0
    %v1010 = vadd.f32 %v234, %v1009
    %1011 = vdwg.mxu0
    %v1012 = vxor.u32 %v990, 2147483648
    %v1013 = vxor.u32 %v1010, 2147483648
    %v1014 = vmul.f32 %v1012, 1.442695
    %v1015 = vpow.pop %v1014
    %v1016 = vmul.f32 %v1013, 1.442695
    %v1017 = vpow.pop %v1016
    %v1018 = vadd.f32 %v1015, 1.0
    %v1019 = vadd.f32 %v1017, 1.0
    %v1020 = vrcp.pop %v1018
    %v1021 = vmul.f32 %v1018, %v1020
    %v1022 = vsub.f32 1.0, %v1021
    %v1023 = vmul.f32 %v1020, %v1022
    %v1024 = vadd.f32 %v1020, %v1023
    %vm1025 = vweird.f32 %v1018
    %vm1026 = vweird.f32 %v1020
    %vm1027 = vmor %vm1025, %vm1026
    %v1028 = vsel %vm1027, %v1020, %v1024
    %v1029 = vand.u32 2147483647, %v1018
    %vm1030 = vcmp.eq.f32.partialorder %v1029, 8.507059e+37
    %v1031 = vand.u32 %v1018, 2147483648
    %v1032 = vor.u32 1.1754944e-38, %v1031
    %v1033 = vsel %vm1030, %v1032, %v1028
    %v1034 = vmul.f32 1.0, %v1033
    %v1035 = vrcp.pop %v1019
    %v1036 = vmul.f32 %v1019, %v1035
    %v1037 = vsub.f32 1.0, %v1036
    %v1038 = vmul.f32 %v1035, %v1037
    %v1039 = vadd.f32 %v1035, %v1038
    %vm1040 = vweird.f32 %v1019
    %vm1041 = vweird.f32 %v1035
    %vm1042 = vmor %vm1040, %vm1041
    %v1043 = vsel %vm1042, %v1035, %v1039
    %v1044 = vand.u32 2147483647, %v1019
    %vm1045 = vcmp.eq.f32.partialorder %v1044, 8.507059e+37
    %v1046 = vand.u32 %v1019, 2147483648
    %v1047 = vor.u32 1.1754944e-38, %v1046
    %v1048 = vsel %vm1045, %v1047, %v1043
    %v1049 = vmul.f32 1.0, %v1048
    %v1050 = vtanh.pop %v990
    %v1051 = vtanh.pop %v1010
    %v1052 = vsel %vm240, %v1034, %v1050
    %v1053 = vsel %vm241, %v1049, %v1051
    %v1054 = vmul.f32 %v1052, %v856
    %1056 = vrot.lane.b32.xlu0 %v1053, 64
    %v1057 = vpop.permute.xlu0 %1056
    %v1059 = vmul.f32 %v1052, %v1057
    %1061 = vrot.lane.b32.xlu0 %v1059, 64
    %v1062 = vpop.permute.xlu0 %1061
    %v1064 = vadd.f32 %v1054, %v1062
    %v1065 = vtanh.pop %v1064
    %1067 = vrot.lane.b32.xlu0 %v1065, 64
    %v1068 = vpop.permute.xlu0 %1067
    %v1070 = vmul.f32 %v1053, %v1068
    %v1072 = vsel %vm242, %v966, 0
    %1074 = vmatpush.msra.mxu0 0.0
    %1075 = vmatpush.msra.mxu0 0.0
    %1076 = vmatpush.msra.mxu0 0.0
    %1077 = vmatpush.msra.mxu0 0.0
    %1078 = vmatpush.msra.mxu0 0.0
    %1079 = vmatpush.msra.mxu0 0.0
    %1080 = vmatpush.msra.mxu0 0.0
    %1081 = vmatpush.msra.mxu0 0.0
    %1082 = vmatpush.msra.mxu0 %v197
    %1083 = vmatpush.msra.mxu0 %v195
    %1084 = vmatpush.msra.mxu0 %v193
    %1085 = vmatpush.msra.mxu0 %v191
    %1086 = vmatpush.msra.mxu0 %v189
    %1087 = vmatpush.msra.mxu0 %v187
    %1088 = vmatpush.msra.mxu0 %v185
    %1089 = vmatpush.msra.mxu0 %v183
    %1090 = vmatmul.f32.gmra.mxu0 %v1072
    %v1091 = vpop.f32.mrf.mxu0
    %v1092 = vadd.f32 0.0, %v1091
    %1093 = vdwg.mxu0
    %1094 = vmatpush.msra.mxu0 0.0
    %1095 = vmatpush.msra.mxu0 0.0
    %1096 = vmatpush.msra.mxu0 0.0
    %1097 = vmatpush.msra.mxu0 0.0
    %1098 = vmatpush.msra.mxu0 0.0
    %1099 = vmatpush.msra.mxu0 0.0
    %1100 = vmatpush.msra.mxu0 0.0
    %1101 = vmatpush.msra.mxu0 0.0
    %1102 = vmatpush.msra.mxu0 %v198
    %1103 = vmatpush.msra.mxu0 %v196
    %1104 = vmatpush.msra.mxu0 %v194
    %1105 = vmatpush.msra.mxu0 %v192
    %1106 = vmatpush.msra.mxu0 %v190
    %1107 = vmatpush.msra.mxu0 %v188
    %1108 = vmatpush.msra.mxu0 %v186
    %1109 = vmatpush.msra.mxu0 %v184
    %1110 = vmatmul.f32.gmra.mxu0 %v1072
    %v1111 = vpop.f32.mrf.mxu0
    %v1112 = vadd.f32 0.0, %v1111
    %1113 = vdwg.mxu0
    %v1114 = vadd.f32 %v131, %v1092
    %v1115 = vadd.f32 %v172, %v1112
    %v1116 = vxor.u32 %v1114, 2147483648
    %v1117 = vxor.u32 %v1115, 2147483648
    %v1118 = vmul.f32 %v1116, 1.442695
    %v1119 = vpow.pop %v1118
    %v1120 = vmul.f32 %v1117, 1.442695
    %v1121 = vpow.pop %v1120
    %v1122 = vadd.f32 %v1119, 1.0
    %v1123 = vadd.f32 %v1121, 1.0
    %v1124 = vrcp.pop %v1122
    %v1125 = vmul.f32 %v1122, %v1124
    %v1126 = vsub.f32 1.0, %v1125
    %v1127 = vmul.f32 %v1124, %v1126
    %v1128 = vadd.f32 %v1124, %v1127
    %vm1129 = vweird.f32 %v1122
    %vm1130 = vweird.f32 %v1124
    %vm1131 = vmor %vm1129, %vm1130
    %v1132 = vsel %vm1131, %v1124, %v1128
    %v1133 = vand.u32 2147483647, %v1122
    %vm1134 = vcmp.eq.f32.partialorder %v1133, 8.507059e+37
    %v1135 = vand.u32 %v1122, 2147483648
    %v1136 = vor.u32 1.1754944e-38, %v1135
    %v1137 = vsel %vm1134, %v1136, %v1132
    %v1138 = vmul.f32 1.0, %v1137
    %v1139 = vrcp.pop %v1123
    %v1140 = vmul.f32 %v1123, %v1139
    %v1141 = vsub.f32 1.0, %v1140
    %v1142 = vmul.f32 %v1139, %v1141
    %v1143 = vadd.f32 %v1139, %v1142
    %vm1144 = vweird.f32 %v1123
    %vm1145 = vweird.f32 %v1139
    %vm1146 = vmor %vm1144, %vm1145
    %v1147 = vsel %vm1146, %v1139, %v1143
    %v1148 = vand.u32 2147483647, %v1123
    %vm1149 = vcmp.eq.f32.partialorder %v1148, 8.507059e+37
    %v1150 = vand.u32 %v1123, 2147483648
    %v1151 = vor.u32 1.1754944e-38, %v1150
    %v1152 = vsel %vm1149, %v1151, %v1147
    %v1153 = vmul.f32 1.0, %v1152
    %v1154 = vtanh.pop %v1114
    %v1155 = vtanh.pop %v1115
    %v1156 = vsel %vm240, %v1138, %v1154
    %v1157 = vsel %vm241, %v1153, %v1155
    %v1158 = vmul.f32 %v1156, %v960
    %1160 = vrot.lane.b32.xlu0 %v1157, 64
    %v1161 = vpop.permute.xlu0 %1160
    %v1163 = vmul.f32 %v1156, %v1161
    %1165 = vrot.lane.b32.xlu0 %v1163, 64
    %v1166 = vpop.permute.xlu0 %1165
    %v1168 = vadd.f32 %v1158, %v1166
    %v1169 = vtanh.pop %v1168
    %1171 = vrot.lane.b32.xlu0 %v1169, 64
    %v1172 = vpop.permute.xlu0 %1171
    %v1174 = vmul.f32 %v1157, %v1172
    %1176 = vrot.lane.b32.xlu0 %v1070, 64
    %v1177 = vpop.permute.xlu0 %1176
    %v1179 = vsel %vm242, %v1174, %v1177
    %1180 = vmatpush.msra.mxu0 %v229
    %1181 = vmatpush.msra.mxu0 %v227
    %1182 = vmatpush.msra.mxu0 %v225
    %1183 = vmatpush.msra.mxu0 %v223
    %1184 = vmatpush.msra.mxu0 %v221
    %1185 = vmatpush.msra.mxu0 %v219
    %1186 = vmatpush.msra.mxu0 %v217
    %1187 = vmatpush.msra.mxu0 %v215
    %1188 = vmatpush.msra.mxu0 %v213
    %1189 = vmatpush.msra.mxu0 %v211
    %1190 = vmatpush.msra.mxu0 %v209
    %1191 = vmatpush.msra.mxu0 %v207
    %1192 = vmatpush.msra.mxu0 %v205
    %1193 = vmatpush.msra.mxu0 %v203
    %1194 = vmatpush.msra.mxu0 %v201
    %1195 = vmatpush.msra.mxu0 %v199
    %1196 = vmatmul.f32.gmra.mxu0 %v1179
    %v1197 = vpop.f32.mrf.mxu0
    %v1198 = vadd.f32 %v233, %v1197
    %1199 = vdwg.mxu0
    %1200 = vmatpush.msra.mxu0 %v230
    %1201 = vmatpush.msra.mxu0 %v228
    %1202 = vmatpush.msra.mxu0 %v226
    %1203 = vmatpush.msra.mxu0 %v224
    %1204 = vmatpush.msra.mxu0 %v222
    %1205 = vmatpush.msra.mxu0 %v220
    %1206 = vmatpush.msra.mxu0 %v218
    %1207 = vmatpush.msra.mxu0 %v216
    %1208 = vmatpush.msra.mxu0 %v214
    %1209 = vmatpush.msra.mxu0 %v212
    %1210 = vmatpush.msra.mxu0 %v210
    %1211 = vmatpush.msra.mxu0 %v208
    %1212 = vmatpush.msra.mxu0 %v206
    %1213 = vmatpush.msra.mxu0 %v204
    %1214 = vmatpush.msra.mxu0 %v202
    %1215 = vmatpush.msra.mxu0 %v200
    %1216 = vmatmul.f32.gmra.mxu0 %v1179
    %v1217 = vpop.f32.mrf.mxu0
    %v1218 = vadd.f32 %v234, %v1217
    %1219 = vdwg.mxu0
    %v1220 = vxor.u32 %v1198, 2147483648
    %v1221 = vxor.u32 %v1218, 2147483648
    %v1222 = vmul.f32 %v1220, 1.442695
    %v1223 = vpow.pop %v1222
    %v1224 = vmul.f32 %v1221, 1.442695
    %v1225 = vpow.pop %v1224
    %v1226 = vadd.f32 %v1223, 1.0
    %v1227 = vadd.f32 %v1225, 1.0
    %v1228 = vrcp.pop %v1226
    %v1229 = vmul.f32 %v1226, %v1228
    %v1230 = vsub.f32 1.0, %v1229
    %v1231 = vmul.f32 %v1228, %v1230
    %v1232 = vadd.f32 %v1228, %v1231
    %vm1233 = vweird.f32 %v1226
    %vm1234 = vweird.f32 %v1228
    %vm1235 = vmor %vm1233, %vm1234
    %v1236 = vsel %vm1235, %v1228, %v1232
    %v1237 = vand.u32 2147483647, %v1226
    %vm1238 = vcmp.eq.f32.partialorder %v1237, 8.507059e+37
    %v1239 = vand.u32 %v1226, 2147483648
    %v1240 = vor.u32 1.1754944e-38, %v1239
    %v1241 = vsel %vm1238, %v1240, %v1236
    %v1242 = vmul.f32 1.0, %v1241
    %v1243 = vrcp.pop %v1227
    %v1244 = vmul.f32 %v1227, %v1243
    %v1245 = vsub.f32 1.0, %v1244
    %v1246 = vmul.f32 %v1243, %v1245
    %v1247 = vadd.f32 %v1243, %v1246
    %vm1248 = vweird.f32 %v1227
    %vm1249 = vweird.f32 %v1243
    %vm1250 = vmor %vm1248, %vm1249
    %v1251 = vsel %vm1250, %v1243, %v1247
    %v1252 = vand.u32 2147483647, %v1227
    %vm1253 = vcmp.eq.f32.partialorder %v1252, 8.507059e+37
    %v1254 = vand.u32 %v1227, 2147483648
    %v1255 = vor.u32 1.1754944e-38, %v1254
    %v1256 = vsel %vm1253, %v1255, %v1251
    %v1257 = vmul.f32 1.0, %v1256
    %v1258 = vtanh.pop %v1198
    %v1259 = vtanh.pop %v1218
    %v1260 = vsel %vm240, %v1242, %v1258
    %v1261 = vsel %vm241, %v1257, %v1259
    %v1262 = vmul.f32 %v1260, %v1064
    %1264 = vrot.lane.b32.xlu0 %v1261, 64
    %v1265 = vpop.permute.xlu0 %1264
    %v1267 = vmul.f32 %v1260, %v1265
    %1269 = vrot.lane.b32.xlu0 %v1267, 64
    %v1270 = vpop.permute.xlu0 %1269
    %v1272 = vadd.f32 %v1262, %v1270
    %v1273 = vtanh.pop %v1272
    %1275 = vrot.lane.b32.xlu0 %v1273, 64
    %v1276 = vpop.permute.xlu0 %1275
    %v1278 = vmul.f32 %v1261, %v1276
    %v1280 = vsel %vm242, %v1174, 0
    %1282 = vmatpush.msra.mxu0 0.0
    %1283 = vmatpush.msra.mxu0 0.0
    %1284 = vmatpush.msra.mxu0 0.0
    %1285 = vmatpush.msra.mxu0 0.0
    %1286 = vmatpush.msra.mxu0 0.0
    %1287 = vmatpush.msra.mxu0 0.0
    %1288 = vmatpush.msra.mxu0 0.0
    %1289 = vmatpush.msra.mxu0 0.0
    %1290 = vmatpush.msra.mxu0 %v197
    %1291 = vmatpush.msra.mxu0 %v195
    %1292 = vmatpush.msra.mxu0 %v193
    %1293 = vmatpush.msra.mxu0 %v191
    %1294 = vmatpush.msra.mxu0 %v189
    %1295 = vmatpush.msra.mxu0 %v187
    %1296 = vmatpush.msra.mxu0 %v185
    %1297 = vmatpush.msra.mxu0 %v183
    %1298 = vmatmul.f32.gmra.mxu0 %v1280
    %v1299 = vpop.f32.mrf.mxu0
    %v1300 = vadd.f32 0.0, %v1299
    %1301 = vdwg.mxu0
    %1302 = vmatpush.msra.mxu0 0.0
    %1303 = vmatpush.msra.mxu0 0.0
    %1304 = vmatpush.msra.mxu0 0.0
    %1305 = vmatpush.msra.mxu0 0.0
    %1306 = vmatpush.msra.mxu0 0.0
    %1307 = vmatpush.msra.mxu0 0.0
    %1308 = vmatpush.msra.mxu0 0.0
    %1309 = vmatpush.msra.mxu0 0.0
    %1310 = vmatpush.msra.mxu0 %v198
    %1311 = vmatpush.msra.mxu0 %v196
    %1312 = vmatpush.msra.mxu0 %v194
    %1313 = vmatpush.msra.mxu0 %v192
    %1314 = vmatpush.msra.mxu0 %v190
    %1315 = vmatpush.msra.mxu0 %v188
    %1316 = vmatpush.msra.mxu0 %v186
    %1317 = vmatpush.msra.mxu0 %v184
    %1318 = vmatmul.f32.gmra.mxu0 %v1280
    %v1319 = vpop.f32.mrf.mxu0
    %v1320 = vadd.f32 0.0, %v1319
    %1321 = vdwg.mxu0
    %v1322 = vadd.f32 %v134, %v1300
    %v1323 = vadd.f32 %v175, %v1320
    %v1324 = vxor.u32 %v1322, 2147483648
    %v1325 = vxor.u32 %v1323, 2147483648
    %v1326 = vmul.f32 %v1324, 1.442695
    %v1327 = vpow.pop %v1326
    %v1328 = vmul.f32 %v1325, 1.442695
    %v1329 = vpow.pop %v1328
    %v1330 = vadd.f32 %v1327, 1.0
    %v1331 = vadd.f32 %v1329, 1.0
    %v1332 = vrcp.pop %v1330
    %v1333 = vmul.f32 %v1330, %v1332
    %v1334 = vsub.f32 1.0, %v1333
    %v1335 = vmul.f32 %v1332, %v1334
    %v1336 = vadd.f32 %v1332, %v1335
    %vm1337 = vweird.f32 %v1330
    %vm1338 = vweird.f32 %v1332
    %vm1339 = vmor %vm1337, %vm1338
    %v1340 = vsel %vm1339, %v1332, %v1336
    %v1341 = vand.u32 2147483647, %v1330
    %vm1342 = vcmp.eq.f32.partialorder %v1341, 8.507059e+37
    %v1343 = vand.u32 %v1330, 2147483648
    %v1344 = vor.u32 1.1754944e-38, %v1343
    %v1345 = vsel %vm1342, %v1344, %v1340
    %v1346 = vmul.f32 1.0, %v1345
    %v1347 = vrcp.pop %v1331
    %v1348 = vmul.f32 %v1331, %v1347
    %v1349 = vsub.f32 1.0, %v1348
    %v1350 = vmul.f32 %v1347, %v1349
    %v1351 = vadd.f32 %v1347, %v1350
    %vm1352 = vweird.f32 %v1331
    %vm1353 = vweird.f32 %v1347
    %vm1354 = vmor %vm1352, %vm1353
    %v1355 = vsel %vm1354, %v1347, %v1351
    %v1356 = vand.u32 2147483647, %v1331
    %vm1357 = vcmp.eq.f32.partialorder %v1356, 8.507059e+37
    %v1358 = vand.u32 %v1331, 2147483648
    %v1359 = vor.u32 1.1754944e-38, %v1358
    %v1360 = vsel %vm1357, %v1359, %v1355
    %v1361 = vmul.f32 1.0, %v1360
    %v1362 = vtanh.pop %v1322
    %v1363 = vtanh.pop %v1323
    %v1364 = vsel %vm240, %v1346, %v1362
    %v1365 = vsel %vm241, %v1361, %v1363
    %v1366 = vmul.f32 %v1364, %v1168
    %1368 = vrot.lane.b32.xlu0 %v1365, 64
    %v1369 = vpop.permute.xlu0 %1368
    %v1371 = vmul.f32 %v1364, %v1369
    %1373 = vrot.lane.b32.xlu0 %v1371, 64
    %v1374 = vpop.permute.xlu0 %1373
    %v1376 = vadd.f32 %v1366, %v1374
    %v1377 = vtanh.pop %v1376
    %1379 = vrot.lane.b32.xlu0 %v1377, 64
    %v1380 = vpop.permute.xlu0 %1379
    %v1382 = vmul.f32 %v1365, %v1380
    %1384 = vrot.lane.b32.xlu0 %v1278, 64
    %v1385 = vpop.permute.xlu0 %1384
    %v1387 = vsel %vm242, %v1382, %v1385
    %1388 = vmatpush.msra.mxu0 %v229
    %1389 = vmatpush.msra.mxu0 %v227
    %1390 = vmatpush.msra.mxu0 %v225
    %1391 = vmatpush.msra.mxu0 %v223
    %1392 = vmatpush.msra.mxu0 %v221
    %1393 = vmatpush.msra.mxu0 %v219
    %1394 = vmatpush.msra.mxu0 %v217
    %1395 = vmatpush.msra.mxu0 %v215
    %1396 = vmatpush.msra.mxu0 %v213
    %1397 = vmatpush.msra.mxu0 %v211
    %1398 = vmatpush.msra.mxu0 %v209
    %1399 = vmatpush.msra.mxu0 %v207
    %1400 = vmatpush.msra.mxu0 %v205
    %1401 = vmatpush.msra.mxu0 %v203
    %1402 = vmatpush.msra.mxu0 %v201
    %1403 = vmatpush.msra.mxu0 %v199
    %1404 = vmatmul.f32.gmra.mxu0 %v1387
    %v1405 = vpop.f32.mrf.mxu0
    %v1406 = vadd.f32 %v233, %v1405
    %1407 = vdwg.mxu0
    %1408 = vmatpush.msra.mxu0 %v230
    %1409 = vmatpush.msra.mxu0 %v228
    %1410 = vmatpush.msra.mxu0 %v226
    %1411 = vmatpush.msra.mxu0 %v224
    %1412 = vmatpush.msra.mxu0 %v222
    %1413 = vmatpush.msra.mxu0 %v220
    %1414 = vmatpush.msra.mxu0 %v218
    %1415 = vmatpush.msra.mxu0 %v216
    %1416 = vmatpush.msra.mxu0 %v214
    %1417 = vmatpush.msra.mxu0 %v212
    %1418 = vmatpush.msra.mxu0 %v210
    %1419 = vmatpush.msra.mxu0 %v208
    %1420 = vmatpush.msra.mxu0 %v206
    %1421 = vmatpush.msra.mxu0 %v204
    %1422 = vmatpush.msra.mxu0 %v202
    %1423 = vmatpush.msra.mxu0 %v200
    %1424 = vmatmul.f32.gmra.mxu0 %v1387
    %v1425 = vpop.f32.mrf.mxu0
    %v1426 = vadd.f32 %v234, %v1425
    %1427 = vdwg.mxu0
    %v1428 = vxor.u32 %v1406, 2147483648
    %v1429 = vxor.u32 %v1426, 2147483648
    %v1430 = vmul.f32 %v1428, 1.442695
    %v1431 = vpow.pop %v1430
    %v1432 = vmul.f32 %v1429, 1.442695
    %v1433 = vpow.pop %v1432
    %v1434 = vadd.f32 %v1431, 1.0
    %v1435 = vadd.f32 %v1433, 1.0
    %v1436 = vrcp.pop %v1434
    %v1437 = vmul.f32 %v1434, %v1436
    %v1438 = vsub.f32 1.0, %v1437
    %v1439 = vmul.f32 %v1436, %v1438
    %v1440 = vadd.f32 %v1436, %v1439
    %vm1441 = vweird.f32 %v1434
    %vm1442 = vweird.f32 %v1436
    %vm1443 = vmor %vm1441, %vm1442
    %v1444 = vsel %vm1443, %v1436, %v1440
    %v1445 = vand.u32 2147483647, %v1434
    %vm1446 = vcmp.eq.f32.partialorder %v1445, 8.507059e+37
    %v1447 = vand.u32 %v1434, 2147483648
    %v1448 = vor.u32 1.1754944e-38, %v1447
    %v1449 = vsel %vm1446, %v1448, %v1444
    %v1450 = vmul.f32 1.0, %v1449
    %v1451 = vrcp.pop %v1435
    %v1452 = vmul.f32 %v1435, %v1451
    %v1453 = vsub.f32 1.0, %v1452
    %v1454 = vmul.f32 %v1451, %v1453
    %v1455 = vadd.f32 %v1451, %v1454
    %vm1456 = vweird.f32 %v1435
    %vm1457 = vweird.f32 %v1451
    %vm1458 = vmor %vm1456, %vm1457
    %v1459 = vsel %vm1458, %v1451, %v1455
    %v1460 = vand.u32 2147483647, %v1435
    %vm1461 = vcmp.eq.f32.partialorder %v1460, 8.507059e+37
    %v1462 = vand.u32 %v1435, 2147483648
    %v1463 = vor.u32 1.1754944e-38, %v1462
    %v1464 = vsel %vm1461, %v1463, %v1459
    %v1465 = vmul.f32 1.0, %v1464
    %v1466 = vtanh.pop %v1406
    %v1467 = vtanh.pop %v1426
    %v1468 = vsel %vm240, %v1450, %v1466
    %v1469 = vsel %vm241, %v1465, %v1467
    %v1470 = vmul.f32 %v1468, %v1272
    %1472 = vrot.lane.b32.xlu0 %v1469, 64
    %v1473 = vpop.permute.xlu0 %1472
    %v1475 = vmul.f32 %v1468, %v1473
    %1477 = vrot.lane.b32.xlu0 %v1475, 64
    %v1478 = vpop.permute.xlu0 %1477
    %v1480 = vadd.f32 %v1470, %v1478
    %v1481 = vtanh.pop %v1480
    %1483 = vrot.lane.b32.xlu0 %v1481, 64
    %v1484 = vpop.permute.xlu0 %1483
    %v1486 = vmul.f32 %v1469, %v1484
    %v1488 = vsel %vm242, %v1382, 0
    %1490 = vmatpush.msra.mxu0 0.0
    %1491 = vmatpush.msra.mxu0 0.0
    %1492 = vmatpush.msra.mxu0 0.0
    %1493 = vmatpush.msra.mxu0 0.0
    %1494 = vmatpush.msra.mxu0 0.0
    %1495 = vmatpush.msra.mxu0 0.0
    %1496 = vmatpush.msra.mxu0 0.0
    %1497 = vmatpush.msra.mxu0 0.0
    %1498 = vmatpush.msra.mxu0 %v197
    %1499 = vmatpush.msra.mxu0 %v195
    %1500 = vmatpush.msra.mxu0 %v193
    %1501 = vmatpush.msra.mxu0 %v191
    %1502 = vmatpush.msra.mxu0 %v189
    %1503 = vmatpush.msra.mxu0 %v187
    %1504 = vmatpush.msra.mxu0 %v185
    %1505 = vmatpush.msra.mxu0 %v183
    %1506 = vmatmul.f32.gmra.mxu0 %v1488
    %v1507 = vpop.f32.mrf.mxu0
    %v1508 = vadd.f32 0.0, %v1507
    %1509 = vdwg.mxu0
    %1510 = vmatpush.msra.mxu0 0.0
    %1511 = vmatpush.msra.mxu0 0.0
    %1512 = vmatpush.msra.mxu0 0.0
    %1513 = vmatpush.msra.mxu0 0.0
    %1514 = vmatpush.msra.mxu0 0.0
    %1515 = vmatpush.msra.mxu0 0.0
    %1516 = vmatpush.msra.mxu0 0.0
    %1517 = vmatpush.msra.mxu0 0.0
    %1518 = vmatpush.msra.mxu0 %v198
    %1519 = vmatpush.msra.mxu0 %v196
    %1520 = vmatpush.msra.mxu0 %v194
    %1521 = vmatpush.msra.mxu0 %v192
    %1522 = vmatpush.msra.mxu0 %v190
    %1523 = vmatpush.msra.mxu0 %v188
    %1524 = vmatpush.msra.mxu0 %v186
    %1525 = vmatpush.msra.mxu0 %v184
    %1526 = vmatmul.f32.gmra.mxu0 %v1488
    %v1527 = vpop.f32.mrf.mxu0
    %v1528 = vadd.f32 0.0, %v1527
    %1529 = vdwg.mxu0
    %v1530 = vadd.f32 %v137, %v1508
    %v1531 = vadd.f32 %v178, %v1528
    %v1532 = vxor.u32 %v1530, 2147483648
    %v1533 = vxor.u32 %v1531, 2147483648
    %v1534 = vmul.f32 %v1532, 1.442695
    %v1535 = vpow.pop %v1534
    %v1536 = vmul.f32 %v1533, 1.442695
    %v1537 = vpow.pop %v1536
    %v1538 = vadd.f32 %v1535, 1.0
    %v1539 = vadd.f32 %v1537, 1.0
    %v1540 = vrcp.pop %v1538
    %v1541 = vmul.f32 %v1538, %v1540
    %v1542 = vsub.f32 1.0, %v1541
    %v1543 = vmul.f32 %v1540, %v1542
    %v1544 = vadd.f32 %v1540, %v1543
    %vm1545 = vweird.f32 %v1538
    %vm1546 = vweird.f32 %v1540
    %vm1547 = vmor %vm1545, %vm1546
    %v1548 = vsel %vm1547, %v1540, %v1544
    %v1549 = vand.u32 2147483647, %v1538
    %vm1550 = vcmp.eq.f32.partialorder %v1549, 8.507059e+37
    %v1551 = vand.u32 %v1538, 2147483648
    %v1552 = vor.u32 1.1754944e-38, %v1551
    %v1553 = vsel %vm1550, %v1552, %v1548
    %v1554 = vmul.f32 1.0, %v1553
    %v1555 = vrcp.pop %v1539
    %v1556 = vmul.f32 %v1539, %v1555
    %v1557 = vsub.f32 1.0, %v1556
    %v1558 = vmul.f32 %v1555, %v1557
    %v1559 = vadd.f32 %v1555, %v1558
    %vm1560 = vweird.f32 %v1539
    %vm1561 = vweird.f32 %v1555
    %vm1562 = vmor %vm1560, %vm1561
    %v1563 = vsel %vm1562, %v1555, %v1559
    %v1564 = vand.u32 2147483647, %v1539
    %vm1565 = vcmp.eq.f32.partialorder %v1564, 8.507059e+37
    %v1566 = vand.u32 %v1539, 2147483648
    %v1567 = vor.u32 1.1754944e-38, %v1566
    %v1568 = vsel %vm1565, %v1567, %v1563
    %v1569 = vmul.f32 1.0, %v1568
    %v1570 = vtanh.pop %v1530
    %v1571 = vtanh.pop %v1531
    %v1572 = vsel %vm240, %v1554, %v1570
    %v1573 = vsel %vm241, %v1569, %v1571
    %v1574 = vmul.f32 %v1572, %v1376
    %1576 = vrot.lane.b32.xlu0 %v1573, 64
    %v1577 = vpop.permute.xlu0 %1576
    %v1579 = vmul.f32 %v1572, %v1577
    %1581 = vrot.lane.b32.xlu0 %v1579, 64
    %v1582 = vpop.permute.xlu0 %1581
    %v1584 = vadd.f32 %v1574, %v1582
    %v1585 = vtanh.pop %v1584
    %1587 = vrot.lane.b32.xlu0 %v1585, 64
    %v1588 = vpop.permute.xlu0 %1587
    %v1590 = vmul.f32 %v1573, %v1588
    %1592 = vrot.lane.b32.xlu0 %v1486, 64
    %v1593 = vpop.permute.xlu0 %1592
    %v1595 = vsel %vm242, %v1590, %v1593
    %1596 = vmatpush.msra.mxu0 %v229
    %1597 = vmatpush.msra.mxu0 %v227
    %1598 = vmatpush.msra.mxu0 %v225
    %1599 = vmatpush.msra.mxu0 %v223
    %1600 = vmatpush.msra.mxu0 %v221
    %1601 = vmatpush.msra.mxu0 %v219
    %1602 = vmatpush.msra.mxu0 %v217
    %1603 = vmatpush.msra.mxu0 %v215
    %1604 = vmatpush.msra.mxu0 %v213
    %1605 = vmatpush.msra.mxu0 %v211
    %1606 = vmatpush.msra.mxu0 %v209
    %1607 = vmatpush.msra.mxu0 %v207
    %1608 = vmatpush.msra.mxu0 %v205
    %1609 = vmatpush.msra.mxu0 %v203
    %1610 = vmatpush.msra.mxu0 %v201
    %1611 = vmatpush.msra.mxu0 %v199
    %1612 = vmatmul.f32.gmra.mxu0 %v1595
    %v1613 = vpop.f32.mrf.mxu0
    %v1614 = vadd.f32 %v233, %v1613
    %1615 = vdwg.mxu0
    %1616 = vmatpush.msra.mxu0 %v230
    %1617 = vmatpush.msra.mxu0 %v228
    %1618 = vmatpush.msra.mxu0 %v226
    %1619 = vmatpush.msra.mxu0 %v224
    %1620 = vmatpush.msra.mxu0 %v222
    %1621 = vmatpush.msra.mxu0 %v220
    %1622 = vmatpush.msra.mxu0 %v218
    %1623 = vmatpush.msra.mxu0 %v216
    %1624 = vmatpush.msra.mxu0 %v214
    %1625 = vmatpush.msra.mxu0 %v212
    %1626 = vmatpush.msra.mxu0 %v210
    %1627 = vmatpush.msra.mxu0 %v208
    %1628 = vmatpush.msra.mxu0 %v206
    %1629 = vmatpush.msra.mxu0 %v204
    %1630 = vmatpush.msra.mxu0 %v202
    %1631 = vmatpush.msra.mxu0 %v200
    %1632 = vmatmul.f32.gmra.mxu0 %v1595
    %v1633 = vpop.f32.mrf.mxu0
    %v1634 = vadd.f32 %v234, %v1633
    %1635 = vdwg.mxu0
    %v1636 = vxor.u32 %v1614, 2147483648
    %v1637 = vxor.u32 %v1634, 2147483648
    %v1638 = vmul.f32 %v1636, 1.442695
    %v1639 = vpow.pop %v1638
    %v1640 = vmul.f32 %v1637, 1.442695
    %v1641 = vpow.pop %v1640
    %v1642 = vadd.f32 %v1639, 1.0
    %v1643 = vadd.f32 %v1641, 1.0
    %v1644 = vrcp.pop %v1642
    %v1645 = vmul.f32 %v1642, %v1644
    %v1646 = vsub.f32 1.0, %v1645
    %v1647 = vmul.f32 %v1644, %v1646
    %v1648 = vadd.f32 %v1644, %v1647
    %vm1649 = vweird.f32 %v1642
    %vm1650 = vweird.f32 %v1644
    %vm1651 = vmor %vm1649, %vm1650
    %v1652 = vsel %vm1651, %v1644, %v1648
    %v1653 = vand.u32 2147483647, %v1642
    %vm1654 = vcmp.eq.f32.partialorder %v1653, 8.507059e+37
    %v1655 = vand.u32 %v1642, 2147483648
    %v1656 = vor.u32 1.1754944e-38, %v1655
    %v1657 = vsel %vm1654, %v1656, %v1652
    %v1658 = vmul.f32 1.0, %v1657
    %v1659 = vrcp.pop %v1643
    %v1660 = vmul.f32 %v1643, %v1659
    %v1661 = vsub.f32 1.0, %v1660
    %v1662 = vmul.f32 %v1659, %v1661
    %v1663 = vadd.f32 %v1659, %v1662
    %vm1664 = vweird.f32 %v1643
    %vm1665 = vweird.f32 %v1659
    %vm1666 = vmor %vm1664, %vm1665
    %v1667 = vsel %vm1666, %v1659, %v1663
    %v1668 = vand.u32 2147483647, %v1643
    %vm1669 = vcmp.eq.f32.partialorder %v1668, 8.507059e+37
    %v1670 = vand.u32 %v1643, 2147483648
    %v1671 = vor.u32 1.1754944e-38, %v1670
    %v1672 = vsel %vm1669, %v1671, %v1667
    %v1673 = vmul.f32 1.0, %v1672
    %v1674 = vtanh.pop %v1614
    %v1675 = vtanh.pop %v1634
    %v1676 = vsel %vm240, %v1658, %v1674
    %v1677 = vsel %vm241, %v1673, %v1675
    %v1678 = vmul.f32 %v1676, %v1480
    %1680 = vrot.lane.b32.xlu0 %v1677, 64
    %v1681 = vpop.permute.xlu0 %1680
    %v1683 = vmul.f32 %v1676, %v1681
    %1685 = vrot.lane.b32.xlu0 %v1683, 64
    %v1686 = vpop.permute.xlu0 %1685
    %v1688 = vadd.f32 %v1678, %v1686
    %v1689 = vtanh.pop %v1688
    %1691 = vrot.lane.b32.xlu0 %v1689, 64
    %v1692 = vpop.permute.xlu0 %1691
    %v1694 = vmul.f32 %v1677, %v1692
    %v1696 = vsel %vm242, %v1590, 0
    %1698 = vmatpush.msra.mxu0 0.0
    %1699 = vmatpush.msra.mxu0 0.0
    %1700 = vmatpush.msra.mxu0 0.0
    %1701 = vmatpush.msra.mxu0 0.0
    %1702 = vmatpush.msra.mxu0 0.0
    %1703 = vmatpush.msra.mxu0 0.0
    %1704 = vmatpush.msra.mxu0 0.0
    %1705 = vmatpush.msra.mxu0 0.0
    %1706 = vmatpush.msra.mxu0 %v197
    %1707 = vmatpush.msra.mxu0 %v195
    %1708 = vmatpush.msra.mxu0 %v193
    %1709 = vmatpush.msra.mxu0 %v191
    %1710 = vmatpush.msra.mxu0 %v189
    %1711 = vmatpush.msra.mxu0 %v187
    %1712 = vmatpush.msra.mxu0 %v185
    %1713 = vmatpush.msra.mxu0 %v183
    %1714 = vmatmul.f32.gmra.mxu0 %v1696
    %v1715 = vpop.f32.mrf.mxu0
    %v1716 = vadd.f32 0.0, %v1715
    %1717 = vdwg.mxu0
    %1718 = vmatpush.msra.mxu0 0.0
    %1719 = vmatpush.msra.mxu0 0.0
    %1720 = vmatpush.msra.mxu0 0.0
    %1721 = vmatpush.msra.mxu0 0.0
    %1722 = vmatpush.msra.mxu0 0.0
    %1723 = vmatpush.msra.mxu0 0.0
    %1724 = vmatpush.msra.mxu0 0.0
    %1725 = vmatpush.msra.mxu0 0.0
    %1726 = vmatpush.msra.mxu0 %v198
    %1727 = vmatpush.msra.mxu0 %v196
    %1728 = vmatpush.msra.mxu0 %v194
    %1729 = vmatpush.msra.mxu0 %v192
    %1730 = vmatpush.msra.mxu0 %v190
    %1731 = vmatpush.msra.mxu0 %v188
    %1732 = vmatpush.msra.mxu0 %v186
    %1733 = vmatpush.msra.mxu0 %v184
    %1734 = vmatmul.f32.gmra.mxu0 %v1696
    %v1735 = vpop.f32.mrf.mxu0
    %v1736 = vadd.f32 0.0, %v1735
    %1737 = vdwg.mxu0
    %v1738 = vadd.f32 %v140, %v1716
    %v1739 = vadd.f32 %v181, %v1736
    %v1740 = vxor.u32 %v1738, 2147483648
    %v1741 = vxor.u32 %v1739, 2147483648
    %v1742 = vmul.f32 %v1740, 1.442695
    %v1743 = vpow.pop %v1742
    %v1744 = vmul.f32 %v1741, 1.442695
    %v1745 = vpow.pop %v1744
    %v1746 = vadd.f32 %v1743, 1.0
    %v1747 = vadd.f32 %v1745, 1.0
    %v1748 = vrcp.pop %v1746
    %v1749 = vmul.f32 %v1746, %v1748
    %v1750 = vsub.f32 1.0, %v1749
    %v1751 = vmul.f32 %v1748, %v1750
    %v1752 = vadd.f32 %v1748, %v1751
    %vm1753 = vweird.f32 %v1746
    %vm1754 = vweird.f32 %v1748
    %vm1755 = vmor %vm1753, %vm1754
    %v1756 = vsel %vm1755, %v1748, %v1752
    %v1757 = vand.u32 2147483647, %v1746
    %vm1758 = vcmp.eq.f32.partialorder %v1757, 8.507059e+37
    %v1759 = vand.u32 %v1746, 2147483648
    %v1760 = vor.u32 1.1754944e-38, %v1759
    %v1761 = vsel %vm1758, %v1760, %v1756
    %v1762 = vmul.f32 1.0, %v1761
    %v1763 = vrcp.pop %v1747
    %v1764 = vmul.f32 %v1747, %v1763
    %v1765 = vsub.f32 1.0, %v1764
    %v1766 = vmul.f32 %v1763, %v1765
    %v1767 = vadd.f32 %v1763, %v1766
    %vm1768 = vweird.f32 %v1747
    %vm1769 = vweird.f32 %v1763
    %vm1770 = vmor %vm1768, %vm1769
    %v1771 = vsel %vm1770, %v1763, %v1767
    %v1772 = vand.u32 2147483647, %v1747
    %vm1773 = vcmp.eq.f32.partialorder %v1772, 8.507059e+37
    %v1774 = vand.u32 %v1747, 2147483648
    %v1775 = vor.u32 1.1754944e-38, %v1774
    %v1776 = vsel %vm1773, %v1775, %v1771
    %v1777 = vmul.f32 1.0, %v1776
    %v1778 = vtanh.pop %v1738
    %v1779 = vtanh.pop %v1739
    %v1780 = vsel %vm240, %v1762, %v1778
    %v1781 = vsel %vm241, %v1777, %v1779
    %v1782 = vmul.f32 %v1780, %v1584
    %1784 = vrot.lane.b32.xlu0 %v1781, 64
    %v1785 = vpop.permute.xlu0 %1784
    %v1787 = vmul.f32 %v1780, %v1785
    %1789 = vrot.lane.b32.xlu0 %v1787, 64
    %v1790 = vpop.permute.xlu0 %1789
    %v1792 = vadd.f32 %v1782, %v1790
    %v1793 = vtanh.pop %v1792
    %1795 = vrot.lane.b32.xlu0 %v1793, 64
    %v1796 = vpop.permute.xlu0 %1795
    %v1798 = vmul.f32 %v1781, %v1796
    %1800 = vrot.lane.b32.xlu0 %v1694, 64
    %v1801 = vpop.permute.xlu0 %1800
    %v1803 = vsel %vm242, %v1798, %v1801
    %1804 = vmatpush.msra.mxu0 %v229
    %1805 = vmatpush.msra.mxu0 %v227
    %1806 = vmatpush.msra.mxu0 %v225
    %1807 = vmatpush.msra.mxu0 %v223
    %1808 = vmatpush.msra.mxu0 %v221
    %1809 = vmatpush.msra.mxu0 %v219
    %1810 = vmatpush.msra.mxu0 %v217
    %1811 = vmatpush.msra.mxu0 %v215
    %1812 = vmatpush.msra.mxu0 %v213
    %1813 = vmatpush.msra.mxu0 %v211
    %1814 = vmatpush.msra.mxu0 %v209
    %1815 = vmatpush.msra.mxu0 %v207
    %1816 = vmatpush.msra.mxu0 %v205
    %1817 = vmatpush.msra.mxu0 %v203
    %1818 = vmatpush.msra.mxu0 %v201
    %1819 = vmatpush.msra.mxu0 %v199
    %1820 = vmatmul.f32.gmra.mxu0 %v1803
    %v1821 = vpop.f32.mrf.mxu0
    %v1822 = vadd.f32 %v233, %v1821
    %1823 = vdwg.mxu0
    %1824 = vmatpush.msra.mxu0 %v230
    %1825 = vmatpush.msra.mxu0 %v228
    %1826 = vmatpush.msra.mxu0 %v226
    %1827 = vmatpush.msra.mxu0 %v224
    %1828 = vmatpush.msra.mxu0 %v222
    %1829 = vmatpush.msra.mxu0 %v220
    %1830 = vmatpush.msra.mxu0 %v218
    %1831 = vmatpush.msra.mxu0 %v216
    %1832 = vmatpush.msra.mxu0 %v214
    %1833 = vmatpush.msra.mxu0 %v212
    %1834 = vmatpush.msra.mxu0 %v210
    %1835 = vmatpush.msra.mxu0 %v208
    %1836 = vmatpush.msra.mxu0 %v206
    %1837 = vmatpush.msra.mxu0 %v204
    %1838 = vmatpush.msra.mxu0 %v202
    %1839 = vmatpush.msra.mxu0 %v200
    %1840 = vmatmul.f32.gmra.mxu0 %v1803
    %v1841 = vpop.f32.mrf.mxu0
    %v1842 = vadd.f32 %v234, %v1841
    %1843 = vdwg.mxu0
    %v1844 = vxor.u32 %v1822, 2147483648
    %v1845 = vxor.u32 %v1842, 2147483648
    %v1846 = vmul.f32 %v1844, 1.442695
    %v1847 = vpow.pop %v1846
    %v1848 = vmul.f32 %v1845, 1.442695
    %v1849 = vpow.pop %v1848
    %v1850 = vadd.f32 %v1847, 1.0
    %v1851 = vadd.f32 %v1849, 1.0
    %v1852 = vrcp.pop %v1850
    %v1853 = vmul.f32 %v1850, %v1852
    %v1854 = vsub.f32 1.0, %v1853
    %v1855 = vmul.f32 %v1852, %v1854
    %v1856 = vadd.f32 %v1852, %v1855
    %vm1857 = vweird.f32 %v1850
    %vm1858 = vweird.f32 %v1852
    %vm1859 = vmor %vm1857, %vm1858
    %v1860 = vsel %vm1859, %v1852, %v1856
    %v1861 = vand.u32 2147483647, %v1850
    %vm1862 = vcmp.eq.f32.partialorder %v1861, 8.507059e+37
    %v1863 = vand.u32 %v1850, 2147483648
    %v1864 = vor.u32 1.1754944e-38, %v1863
    %v1865 = vsel %vm1862, %v1864, %v1860
    %v1866 = vmul.f32 1.0, %v1865
    %v1867 = vrcp.pop %v1851
    %v1868 = vmul.f32 %v1851, %v1867
    %v1869 = vsub.f32 1.0, %v1868
    %v1870 = vmul.f32 %v1867, %v1869
    %v1871 = vadd.f32 %v1867, %v1870
    %vm1872 = vweird.f32 %v1851
    %vm1873 = vweird.f32 %v1867
    %vm1874 = vmor %vm1872, %vm1873
    %v1875 = vsel %vm1874, %v1867, %v1871
    %v1876 = vand.u32 2147483647, %v1851
    %vm1877 = vcmp.eq.f32.partialorder %v1876, 8.507059e+37
    %v1878 = vand.u32 %v1851, 2147483648
    %v1879 = vor.u32 1.1754944e-38, %v1878
    %v1880 = vsel %vm1877, %v1879, %v1875
    %v1881 = vmul.f32 1.0, %v1880
    %v1882 = vtanh.pop %v1822
    %v1883 = vtanh.pop %v1842
    %v1884 = vsel %vm240, %v1866, %v1882
    %v1885 = vsel %vm241, %v1881, %v1883
    %v1886 = vmul.f32 %v1884, %v1688
    %1888 = vrot.lane.b32.xlu0 %v1885, 64
    %v1889 = vpop.permute.xlu0 %1888
    %v1891 = vmul.f32 %v1884, %v1889
    %1893 = vrot.lane.b32.xlu0 %v1891, 64
    %v1894 = vpop.permute.xlu0 %1893
    %v1896 = vadd.f32 %v1886, %v1894
    %v1897 = vtanh.pop %v1896
    %1899 = vrot.lane.b32.xlu0 %v1897, 64
    %v1900 = vpop.permute.xlu0 %1899
    %v1902 = vmul.f32 %v1885, %v1900
    %v1903 = vld [vmem:[%s6] sm:$0xff]
    %v1904 = vld [vmem:[%s6 + $0x8] sm:$0xff]
    %v1905 = vld [vmem:[%s6 + $0x10] sm:$0xff]
    %v1906 = vld [vmem:[%s6 + $0x18] sm:$0xff]
    %v1907 = vld [vmem:[%s6 + $0x20] sm:$0xff]
    %v1908 = vld [vmem:[%s6 + $0x28] sm:$0xff]
    %v1909 = vld [vmem:[%s6 + $0x30] sm:$0xff]
    %v1910 = vld [vmem:[%s6 + $0x38] sm:$0xff]
    %v1911 = vld [vmem:[%s7] sm:$0x1]
    %v1913 = vperm.slane %v1911, 0
    %v1916 = vsel %vm242, %v1902, 0
    %1918 = vmatpush.msra.mxu0 0.0
    %1919 = vmatpush.msra.mxu0 0.0
    %1920 = vmatpush.msra.mxu0 0.0
    %1921 = vmatpush.msra.mxu0 0.0
    %1922 = vmatpush.msra.mxu0 0.0
    %1923 = vmatpush.msra.mxu0 0.0
    %1924 = vmatpush.msra.mxu0 0.0
    %1925 = vmatpush.msra.mxu0 0.0
    %1926 = vmatpush.msra.mxu0 %v1910
    %1927 = vmatpush.msra.mxu0 %v1909
    %1928 = vmatpush.msra.mxu0 %v1908
    %1929 = vmatpush.msra.mxu0 %v1907
    %1930 = vmatpush.msra.mxu0 %v1906
    %1931 = vmatpush.msra.mxu0 %v1905
    %1932 = vmatpush.msra.mxu0 %v1904
    %1933 = vmatpush.msra.mxu0 %v1903
    %1934 = vmatmul.f32.gmra.mxu0 %v1916
    %v1935 = vpop.f32.mrf.mxu0
    %v1936 = vadd.f32 %v1913, %v1935
    %1937 = vdwg.mxu0
    %1938 = vst [vmem:[%s8] sm:$0xff] %v1936
    // Predicated region
    $region38: #{ehpi_lstm_forward.1} parent=1 // pred_check
      _
    $region39: #{ehpi_lstm_forward.1} parent=1 // pred_check_branch
      %1940 = sbr.rel (0) target = $region41
    $region40: #{ehpi_lstm_forward.1} parent=1 // pred_region
      _
    $region41: #{ehpi_lstm_forward.1} parent=1 // pred_fallthru
      _
    // Predicated region
    $region42: #{ehpi_lstm_forward.1} parent=1 // pred_check
      _
    $region43: #{ehpi_lstm_forward.1} parent=1 // pred_check_branch
      %1942 = sbr.rel (0) target = $region45
    $region44: #{ehpi_lstm_forward.1} parent=1 // pred_region
      _
    $region45: #{ehpi_lstm_forward.1} parent=1 // pred_fallthru
      _
    %1943 = vsyncpa [#allocation3], 1

</llo_original>
